<compile_context>
chip_gen: v5e
topology: v5e:2x2
jax: 0.10.0
libtpu: 0.0.40
codegen_flags: <defaults>
</compile_context>

<pallas_src>
import math
from functools import partial

import jax
import jax.numpy as jnp
from jax.experimental import pallas as pl
from jax.experimental.pallas import tpu as pltpu


# ----------------------------------------------------------------------------
# Fused decoder-layer kernel
# ----------------------------------------------------------------------------

def _decoder_layer_kernel(
    # activations (batch-major 2-D views)
    x_ref, qe_ref, mem_ref, pos_ref,
    # self-attention params (weights pre-transposed to (in, out))
    sa_wqk_ref, sa_bqk_ref, sa_wv_ref, sa_bv_ref, sa_wo_ref, sa_bo_ref,
    ln1_g_ref, ln1_b_ref,
    # cross-attention params
    ca_wq_ref, ca_bq_ref, ca_wk_ref, ca_bk_ref, ca_wv_ref, ca_bv_ref,
    ca_wo_ref, ca_bo_ref, ln2_g_ref, ln2_b_ref,
    # FFN params
    ffn_w1_ref, ffn_b1_ref, ffn_w2_ref, ffn_b2_ref, ln3_g_ref, ln3_b_ref,
    # output
    o_ref,
    *, num_heads, n_batch, lq, lk):

    E = x_ref.shape[-1]
    hd = E // num_heads

    def mm(a, b):
        return jnp.dot(a, b, preferred_element_type=jnp.float32)

    def layer_norm(z, g_ref, b_ref):
        # LayerNorm over last dim, eps = 1e-5 (PyTorch default).
        mean = jnp.mean(z, axis=-1, keepdims=True)
        c = z - mean
        var = jnp.mean(c * c, axis=-1, keepdims=True)
        return c * jax.lax.rsqrt(var + 1e-5) * g_ref[...] + b_ref[...]

    def attention(q2d, k2d, v2d, wo_ref, bo_ref, l_kv):
        # q2d: (n_batch*lq, E) -- already scaled by 1/sqrt(hd) via weight fold.
        # k2d/v2d: (n_batch*l_kv, E).  Heads are looped (static unroll) and
        # batched over the batch dim; the out-projection is fused per head so
        # the result is accumulated as a lane-dense (n_batch*lq, E) slab.
        out = None
        for h in range(num_heads):
            c0, c1 = h * hd, (h + 1) * hd
            qh = q2d[:, c0:c1].reshape(n_batch, lq, hd)
            kh = k2d[:, c0:c1].reshape(n_batch, l_kv, hd)
            vh = v2d[:, c0:c1].reshape(n_batch, l_kv, hd)
            s = jnp.einsum("nqd,nkd->nqk", qh, kh,
                           preferred_element_type=jnp.float32)
            s = s - jnp.max(s, axis=-1, keepdims=True)
            p = jnp.exp(s)
            p = p * pl.reciprocal(jnp.sum(p, axis=-1, keepdims=True),
                                  approx=True)
            oh = jnp.einsum("nqk,nkd->nqd", p, vh,
                            preferred_element_type=jnp.float32)
            contrib = mm(oh.reshape(n_batch * lq, hd), wo_ref[c0:c1, :])
            out = contrib if out is None else out + contrib
        return out + bo_ref[...]

    x = x_ref[...]
    qe = qe_ref[...]
    mem = mem_ref[...]
    pos = pos_ref[...]

    # ---- self attention: Q/K share input -> one fused (E, 2E) projection ----
    q_self = x + qe
    qk = mm(q_self, sa_wqk_ref[...]) + sa_bqk_ref[...]        # (M, 2E)
    v = mm(x, sa_wv_ref[...]) + sa_bv_ref[...]                # (M, E)
    sa = attention(qk[:, :E], qk[:, E:], v, sa_wo_ref, sa_bo_ref, lq)
    x = layer_norm(x + sa, ln1_g_ref, ln1_b_ref)

    # ---- cross attention ----
    q = mm(x + qe, ca_wq_ref[...]) + ca_bq_ref[...]
    k = mm(mem + pos, ca_wk_ref[...]) + ca_bk_ref[...]
    v = mm(mem, ca_wv_ref[...]) + ca_bv_ref[...]
    ca = attention(q, k, v, ca_wo_ref, ca_bo_ref, lk)
    x = layer_norm(x + ca, ln2_g_ref, ln2_b_ref)

    # ---- FFN (Linear -> ReLU -> Linear; dropout = identity) ----
    h = jnp.maximum(mm(x, ffn_w1_ref[...]) + ffn_b1_ref[...], 0.0)
    f = mm(h, ffn_w2_ref[...]) + ffn_b2_ref[...]
    o_ref[...] = layer_norm(x + f, ln3_g_ref, ln3_b_ref)


# ----------------------------------------------------------------------------
# Wrapper: weight re-layout (transpose / concat / scale-fold) + one pallas_call
# ----------------------------------------------------------------------------

def transformer_decoder_layer(x, memory, pos_embed, query_embed, P, num_heads):
    Lq, N, E = x.shape
    Lk = memory.shape[0]
    hd = E // num_heads
    scale = 1.0 / math.sqrt(hd)

    def to2d(t):  # (L, N, E) -> batch-major (N*L, E)
        return t.transpose(1, 0, 2).reshape(-1, E)

    x2d, mem2d = to2d(x), to2d(memory)
    pos2d, qe2d = to2d(pos_embed), to2d(query_embed)

    sa, ca = P["self_attn"], P["cross_attn"]

    wq_s, wk_s, wv_s = jnp.split(sa["in_w"], 3, axis=0)
    bq_s, bk_s, bv_s = jnp.split(sa["in_b"], 3)
    sa_wqk = jnp.concatenate([wq_s.T * scale, wk_s.T], axis=1)   # (E, 2E)
    sa_bqk = jnp.concatenate([bq_s * scale, bk_s])[None, :]      # (1, 2E)
    sa_wv, sa_bv = wv_s.T, bv_s[None, :]
    sa_wo, sa_bo = sa["out_w"].T, sa["out_b"][None, :]

    wq_c, wk_c, wv_c = jnp.split(ca["in_w"], 3, axis=0)
    bq_c, bk_c, bv_c = jnp.split(ca["in_b"], 3)
    ca_wq, ca_bq = wq_c.T * scale, (bq_c * scale)[None, :]
    ca_wk, ca_bk = wk_c.T, bk_c[None, :]
    ca_wv, ca_bv = wv_c.T, bv_c[None, :]
    ca_wo, ca_bo = ca["out_w"].T, ca["out_b"][None, :]

    args = (
        x2d, qe2d, mem2d, pos2d,
        sa_wqk, sa_bqk, sa_wv, sa_bv, sa_wo, sa_bo,
        P["ln1_g"][None, :], P["ln1_b"][None, :],
        ca_wq, ca_bq, ca_wk, ca_bk, ca_wv, ca_bv, ca_wo, ca_bo,
        P["ln2_g"][None, :], P["ln2_b"][None, :],
        P["ffn_w1"].T, P["ffn_b1"][None, :],
        P["ffn_w2"].T, P["ffn_b2"][None, :],
        P["ln3_g"][None, :], P["ln3_b"][None, :],
    )

    out2d = pl.pallas_call(
        partial(_decoder_layer_kernel, num_heads=num_heads, n_batch=N,
                lq=Lq, lk=Lk),
        out_shape=jax.ShapeDtypeStruct((N * Lq, E), jnp.float32),
        grid=(1,),
        in_specs=[pl.BlockSpec(a.shape, lambda i: (0, 0)) for a in args],
        out_specs=pl.BlockSpec((N * Lq, E), lambda i: (0, 0)),
        compiler_params=pltpu.CompilerParams(
            dimension_semantics=("arbitrary",)),
    )(*args)

    return out2d.reshape(N, Lq, E).transpose(1, 0, 2)   # back to (Lq, N, E)


# ----------------------------------------------------------------------------
# Pure-JAX reference (numerical sanity check)
# ----------------------------------------------------------------------------

_HI = jax.lax.Precision.HIGHEST


def _ref_mha(q_in, k_in, v_in, p, num_heads):
    Lq, N, E = q_in.shape
    Lk = k_in.shape[0]
    hd = E // num_heads
    wq, wk, wv = jnp.split(p["in_w"], 3, axis=0)
    bq, bk, bv = jnp.split(p["in_b"], 3, axis=0)
    q = jnp.einsum("lne,oe->lno", q_in, wq, precision=_HI) + bq
    k = jnp.einsum("lne,oe->lno", k_in, wk, precision=_HI) + bk
    v = jnp.einsum("lne,oe->lno", v_in, wv, precision=_HI) + bv
    q = q.reshape(Lq, N, num_heads, hd) * (1.0 / math.sqrt(hd))
    k = k.reshape(Lk, N, num_heads, hd)
    v = v.reshape(Lk, N, num_heads, hd)
    s = jnp.einsum("qnhd,knhd->nhqk", q, k, precision=_HI)
    a = jax.nn.softmax(s, axis=-1)
    o = jnp.einsum("nhqk,knhd->qnhd", a, v, precision=_HI).reshape(Lq, N, E)
    return jnp.einsum("lne,oe->lno", o, p["out_w"], precision=_HI) + p["out_b"]


def _ref_ln(z, g, b):
    m = z.mean(-1, keepdims=True)
    v = ((z - m) ** 2).mean(-1, keepdims=True)
    return (z - m) * jax.lax.rsqrt(v + 1e-5) * g + b


def _ref_layer(x, memory, pos_embed, query_embed, P, num_heads):
    sa = _ref_mha(x + query_embed, x + query_embed, x, P["self_attn"], num_heads)
    x = _ref_ln(x + sa, P["ln1_g"], P["ln1_b"])
    ca = _ref_mha(x + query_embed, memory + pos_embed, memory, P["cross_attn"], num_heads)
    x = _ref_ln(x + ca, P["ln2_g"], P["ln2_b"])
    h = jnp.maximum(jnp.einsum("lne,fe->lnf", x, P["ffn_w1"], precision=_HI) + P["ffn_b1"], 0.0)
    f = jnp.einsum("lnf,ef->lne", h, P["ffn_w2"], precision=_HI) + P["ffn_b2"]
    return _ref_ln(x + f, P["ln3_g"], P["ln3_b"])


# ----------------------------------------------------------------------------
# Deterministic parameter init + main
# ----------------------------------------------------------------------------

def init_params(key, E, F):
    ks = iter(jax.random.split(key, 32))

    def w(shape, scale=0.05):
        return (scale * jax.random.normal(next(ks), shape)).astype(jnp.float32)

    def mha_params():
        return {"in_w": w((3 * E, E)), "in_b": w((3 * E,)),
                "out_w": w((E, E)), "out_b": w((E,))}

    return {
        "self_attn": mha_params(),
        "cross_attn": mha_params(),
        "ln1_g": 1.0 + w((E,)), "ln1_b": w((E,)),
        "ln2_g": 1.0 + w((E,)), "ln2_b": w((E,)),
        "ln3_g": 1.0 + w((E,)), "ln3_b": w((E,)),
        "ffn_w1": w((F, E)), "ffn_b1": w((F,)),
        "ffn_w2": w((E, F)), "ffn_b2": w((E,)),
    }


if __name__ == "__main__":
    out_channels = 32     # embed dim E
    ffn_dim = 64
    num_heads = 4
    Lq, Lkv, N = 8, 16, 2  # num queries, memory length, batch

    key = jax.random.PRNGKey(0)
    k_x, k_m, k_p, k_q, k_w = jax.random.split(key, 5)

    x = jax.random.normal(k_x, (Lq, N, out_channels), jnp.float32)
    memory = jax.random.normal(k_m, (Lkv, N, out_channels), jnp.float32)
    pos_embed = jax.random.normal(k_p, (Lkv, N, out_channels), jnp.float32)
    query_embed = jax.random.normal(k_q, (Lq, N, out_channels), jnp.float32)

    params = init_params(k_w, out_channels, ffn_dim)

    out = transformer_decoder_layer(x, memory, pos_embed, query_embed, params, num_heads)
    out = jax.block_until_ready(out)

    ref = _ref_layer(x, memory, pos_embed, query_embed, params, num_heads)
    ref = jax.block_until_ready(ref)

    assert out.shape == (Lq, N, out_channels)
    assert jnp.allclose(out, ref, atol=5e-2, rtol=5e-2), (
        f"max abs diff {jnp.max(jnp.abs(out - ref))}")

    print("KERNEL_OK")
</pallas_src>

<mosaic_0001>
module attributes {stable_mosaic.version = 11 : i64} {
  func.func @_decoder_layer_kernel(%arg0: i32, %arg1: memref<16x32xf32, #tpu.memory_space<vmem>>, %arg2: memref<16x32xf32, #tpu.memory_space<vmem>>, %arg3: memref<32x32xf32, #tpu.memory_space<vmem>>, %arg4: memref<32x32xf32, #tpu.memory_space<vmem>>, %arg5: memref<32x64xf32, #tpu.memory_space<vmem>>, %arg6: memref<1x64xf32, #tpu.memory_space<vmem>>, %arg7: memref<32x32xf32, #tpu.memory_space<vmem>>, %arg8: memref<1x32xf32, #tpu.memory_space<vmem>>, %arg9: memref<32x32xf32, #tpu.memory_space<vmem>>, %arg10: memref<1x32xf32, #tpu.memory_space<vmem>>, %arg11: memref<1x32xf32, #tpu.memory_space<vmem>>, %arg12: memref<1x32xf32, #tpu.memory_space<vmem>>, %arg13: memref<32x32xf32, #tpu.memory_space<vmem>>, %arg14: memref<1x32xf32, #tpu.memory_space<vmem>>, %arg15: memref<32x32xf32, #tpu.memory_space<vmem>>, %arg16: memref<1x32xf32, #tpu.memory_space<vmem>>, %arg17: memref<32x32xf32, #tpu.memory_space<vmem>>, %arg18: memref<1x32xf32, #tpu.memory_space<vmem>>, %arg19: memref<32x32xf32, #tpu.memory_space<vmem>>, %arg20: memref<1x32xf32, #tpu.memory_space<vmem>>, %arg21: memref<1x32xf32, #tpu.memory_space<vmem>>, %arg22: memref<1x32xf32, #tpu.memory_space<vmem>>, %arg23: memref<32x64xf32, #tpu.memory_space<vmem>>, %arg24: memref<1x64xf32, #tpu.memory_space<vmem>>, %arg25: memref<64x32xf32, #tpu.memory_space<vmem>>, %arg26: memref<1x32xf32, #tpu.memory_space<vmem>>, %arg27: memref<1x32xf32, #tpu.memory_space<vmem>>, %arg28: memref<1x32xf32, #tpu.memory_space<vmem>>, %arg29: memref<16x32xf32, #tpu.memory_space<vmem>>) attributes {dimension_semantics = [#tpu.dimension_semantics<arbitrary>], iteration_bounds = array<i64: 1>, scalar_prefetch = 0 : i64, scratch_operands = 0 : i64, tpu.core_type = #tpu.core_type<tc>, window_params = [{pipeline_mode = #tpu.pipeline_mode<synchronous>, transform_indices = @transform_0, window_bounds = array<i64: 16, 32>}, {pipeline_mode = #tpu.pipeline_mode<synchronous>, transform_indices = @transform_1, window_bounds = array<i64: 16, 32>}, {pipeline_mode = #tpu.pipeline_mode<synchronous>, transform_indices = @transform_2, window_bounds = array<i64: 32, 32>}, {pipeline_mode = #tpu.pipeline_mode<synchronous>, transform_indices = @transform_3, window_bounds = array<i64: 32, 32>}, {pipeline_mode = #tpu.pipeline_mode<synchronous>, transform_indices = @transform_4, window_bounds = array<i64: 32, 64>}, {pipeline_mode = #tpu.pipeline_mode<synchronous>, transform_indices = @transform_5, window_bounds = array<i64: 1, 64>}, {pipeline_mode = #tpu.pipeline_mode<synchronous>, transform_indices = @transform_6, window_bounds = array<i64: 32, 32>}, {pipeline_mode = #tpu.pipeline_mode<synchronous>, transform_indices = @transform_7, window_bounds = array<i64: 1, 32>}, {pipeline_mode = #tpu.pipeline_mode<synchronous>, transform_indices = @transform_8, window_bounds = array<i64: 32, 32>}, {pipeline_mode = #tpu.pipeline_mode<synchronous>, transform_indices = @transform_9, window_bounds = array<i64: 1, 32>}, {pipeline_mode = #tpu.pipeline_mode<synchronous>, transform_indices = @transform_10, window_bounds = array<i64: 1, 32>}, {pipeline_mode = #tpu.pipeline_mode<synchronous>, transform_indices = @transform_11, window_bounds = array<i64: 1, 32>}, {pipeline_mode = #tpu.pipeline_mode<synchronous>, transform_indices = @transform_12, window_bounds = array<i64: 32, 32>}, {pipeline_mode = #tpu.pipeline_mode<synchronous>, transform_indices = @transform_13, window_bounds = array<i64: 1, 32>}, {pipeline_mode = #tpu.pipeline_mode<synchronous>, transform_indices = @transform_14, window_bounds = array<i64: 32, 32>}, {pipeline_mode = #tpu.pipeline_mode<synchronous>, transform_indices = @transform_15, window_bounds = array<i64: 1, 32>}, {pipeline_mode = #tpu.pipeline_mode<synchronous>, transform_indices = @transform_16, window_bounds = array<i64: 32, 32>}, {pipeline_mode = #tpu.pipeline_mode<synchronous>, transform_indices = @transform_17, window_bounds = array<i64: 1, 32>}, {pipeline_mode = #tpu.pipeline_mode<synchronous>, transform_indices = @transform_18, window_bounds = array<i64: 32, 32>}, {pipeline_mode = #tpu.pipeline_mode<synchronous>, transform_indices = @transform_19, window_bounds = array<i64: 1, 32>}, {pipeline_mode = #tpu.pipeline_mode<synchronous>, transform_indices = @transform_20, window_bounds = array<i64: 1, 32>}, {pipeline_mode = #tpu.pipeline_mode<synchronous>, transform_indices = @transform_21, window_bounds = array<i64: 1, 32>}, {pipeline_mode = #tpu.pipeline_mode<synchronous>, transform_indices = @transform_22, window_bounds = array<i64: 32, 64>}, {pipeline_mode = #tpu.pipeline_mode<synchronous>, transform_indices = @transform_23, window_bounds = array<i64: 1, 64>}, {pipeline_mode = #tpu.pipeline_mode<synchronous>, transform_indices = @transform_24, window_bounds = array<i64: 64, 32>}, {pipeline_mode = #tpu.pipeline_mode<synchronous>, transform_indices = @transform_25, window_bounds = array<i64: 1, 32>}, {pipeline_mode = #tpu.pipeline_mode<synchronous>, transform_indices = @transform_26, window_bounds = array<i64: 1, 32>}, {pipeline_mode = #tpu.pipeline_mode<synchronous>, transform_indices = @transform_27, window_bounds = array<i64: 1, 32>}, {pipeline_mode = #tpu.pipeline_mode<synchronous>, transform_indices = @transform_28, window_bounds = array<i64: 16, 32>}]} {
    %c0 = arith.constant 0 : index
    %c0_0 = arith.constant 0 : index
    %0 = vector.load %arg1[%c0, %c0_0] : memref<16x32xf32, #tpu.memory_space<vmem>>, vector<16x32xf32>
    %c0_1 = arith.constant 0 : index
    %c0_2 = arith.constant 0 : index
    %1 = vector.load %arg2[%c0_1, %c0_2] : memref<16x32xf32, #tpu.memory_space<vmem>>, vector<16x32xf32>
    %c0_3 = arith.constant 0 : index
    %c0_4 = arith.constant 0 : index
    %2 = vector.load %arg3[%c0_3, %c0_4] : memref<32x32xf32, #tpu.memory_space<vmem>>, vector<32x32xf32>
    %c0_5 = arith.constant 0 : index
    %c0_6 = arith.constant 0 : index
    %3 = vector.load %arg4[%c0_5, %c0_6] : memref<32x32xf32, #tpu.memory_space<vmem>>, vector<32x32xf32>
    %4 = arith.addf %0, %1 : vector<16x32xf32>
    %c0_7 = arith.constant 0 : index
    %c0_8 = arith.constant 0 : index
    %5 = vector.load %arg5[%c0_7, %c0_8] : memref<32x64xf32, #tpu.memory_space<vmem>>, vector<32x64xf32>
    %cst = arith.constant dense<0.000000e+00> : vector<16x64xf32>
    %6 = tpu.matmul %4, %5, %cst {dimension_numbers = #tpu.dot_dimension_numbers<[1], [0], [0], [1], [0, 0, 1, 1], [], []>} : vector<16x32xf32>, vector<32x64xf32>, vector<16x64xf32> -> vector<16x64xf32>
    %c0_9 = arith.constant 0 : index
    %c0_10 = arith.constant 0 : index
    %7 = vector.load %arg6[%c0_9, %c0_10] : memref<1x64xf32, #tpu.memory_space<vmem>>, vector<1x64xf32>
    %8 = vector.broadcast %7 : vector<1x64xf32> to vector<16x64xf32>
    %9 = arith.addf %6, %8 : vector<16x64xf32>
    %c0_11 = arith.constant 0 : index
    %c0_12 = arith.constant 0 : index
    %10 = vector.load %arg7[%c0_11, %c0_12] : memref<32x32xf32, #tpu.memory_space<vmem>>, vector<32x32xf32>
    %cst_13 = arith.constant dense<0.000000e+00> : vector<16x32xf32>
    %11 = tpu.matmul %0, %10, %cst_13 {dimension_numbers = #tpu.dot_dimension_numbers<[1], [0], [0], [1], [0, 0, 1, 1], [], []>} : vector<16x32xf32>, vector<32x32xf32>, vector<16x32xf32> -> vector<16x32xf32>
    %c0_14 = arith.constant 0 : index
    %c0_15 = arith.constant 0 : index
    %12 = vector.load %arg8[%c0_14, %c0_15] : memref<1x32xf32, #tpu.memory_space<vmem>>, vector<1x32xf32>
    %13 = vector.broadcast %12 : vector<1x32xf32> to vector<16x32xf32>
    %14 = arith.addf %11, %13 : vector<16x32xf32>
    %15 = vector.extract_strided_slice %9 {offsets = [0, 0], sizes = [16, 32], strides = [1, 1]} : vector<16x64xf32> to vector<16x32xf32>
    %16 = vector.extract_strided_slice %9 {offsets = [0, 32], sizes = [16, 32], strides = [1, 1]} : vector<16x64xf32> to vector<16x32xf32>
    %17 = vector.extract_strided_slice %15 {offsets = [0, 0], sizes = [16, 8], strides = [1, 1]} : vector<16x32xf32> to vector<16x8xf32>
    %18 = vector.shape_cast %17 : vector<16x8xf32> to vector<2x8x8xf32>
    %19 = vector.extract_strided_slice %16 {offsets = [0, 0], sizes = [16, 8], strides = [1, 1]} : vector<16x32xf32> to vector<16x8xf32>
    %20 = vector.shape_cast %19 : vector<16x8xf32> to vector<2x8x8xf32>
    %21 = vector.extract_strided_slice %14 {offsets = [0, 0], sizes = [16, 8], strides = [1, 1]} : vector<16x32xf32> to vector<16x8xf32>
    %22 = vector.shape_cast %21 : vector<16x8xf32> to vector<2x8x8xf32>
    "tpu.trace_start"() <{level = 10 : i32, message = "nqd,nkd->nqk"}> : () -> ()
    %cst_16 = arith.constant dense<0.000000e+00> : vector<2x8x8xf32>
    %23 = tpu.matmul %18, %20, %cst_16 {dimension_numbers = #tpu.dot_dimension_numbers<[2], [2], [1], [1], [0, 0, 0, 1, 1, 1], [0], [0]>} : vector<2x8x8xf32>, vector<2x8x8xf32>, vector<2x8x8xf32> -> vector<2x8x8xf32>
    "tpu.trace_stop"() : () -> ()
    %cst_17 = arith.constant dense<0xFF800000> : vector<2x8xf32>
    %24 = vector.multi_reduction <maximumf>, %23, %cst_17 [2] : vector<2x8x8xf32> to vector<2x8xf32>
    %25 = vector.shape_cast %24 : vector<2x8xf32> to vector<2x8x1xf32>
    %26 = vector.broadcast %25 : vector<2x8x1xf32> to vector<2x8x8xf32>
    %27 = arith.subf %23, %26 : vector<2x8x8xf32>
    %28 = math.exp %27 : vector<2x8x8xf32>
    %cst_18 = arith.constant dense<0.000000e+00> : vector<2x8xf32>
    %29 = vector.multi_reduction <add>, %28, %cst_18 [2] : vector<2x8x8xf32> to vector<2x8xf32>
    %30 = vector.shape_cast %29 : vector<2x8xf32> to vector<2x8x1xf32>
    %31 = tpu.reciprocal %30 {approx = true} : vector<2x8x1xf32> -> vector<2x8x1xf32>
    %32 = vector.broadcast %31 : vector<2x8x1xf32> to vector<2x8x8xf32>
    %33 = arith.mulf %28, %32 : vector<2x8x8xf32>
    "tpu.trace_start"() <{level = 10 : i32, message = "nqk,nkd->nqd"}> : () -> ()
    %cst_19 = arith.constant dense<0.000000e+00> : vector<2x8x8xf32>
    %34 = tpu.matmul %33, %22, %cst_19 {dimension_numbers = #tpu.dot_dimension_numbers<[2], [1], [1], [2], [0, 0, 0, 1, 1, 2], [0], [0]>} : vector<2x8x8xf32>, vector<2x8x8xf32>, vector<2x8x8xf32> -> vector<2x8x8xf32>
    "tpu.trace_stop"() : () -> ()
    %35 = vector.shape_cast %34 : vector<2x8x8xf32> to vector<16x8xf32>
    %c0_20 = arith.constant 0 : index
    %c0_21 = arith.constant 0 : index
    %36 = vector.load %arg9[%c0_20, %c0_21] : memref<32x32xf32, #tpu.memory_space<vmem>>, vector<8x32xf32>
    %cst_22 = arith.constant dense<0.000000e+00> : vector<16x32xf32>
    %37 = tpu.matmul %35, %36, %cst_22 {dimension_numbers = #tpu.dot_dimension_numbers<[1], [0], [0], [1], [0, 0, 1, 1], [], []>} : vector<16x8xf32>, vector<8x32xf32>, vector<16x32xf32> -> vector<16x32xf32>
    %38 = vector.extract_strided_slice %15 {offsets = [0, 8], sizes = [16, 8], strides = [1, 1]} : vector<16x32xf32> to vector<16x8xf32>
    %39 = vector.shape_cast %38 : vector<16x8xf32> to vector<2x8x8xf32>
    %40 = vector.extract_strided_slice %16 {offsets = [0, 8], sizes = [16, 8], strides = [1, 1]} : vector<16x32xf32> to vector<16x8xf32>
    %41 = vector.shape_cast %40 : vector<16x8xf32> to vector<2x8x8xf32>
    %42 = vector.extract_strided_slice %14 {offsets = [0, 8], sizes = [16, 8], strides = [1, 1]} : vector<16x32xf32> to vector<16x8xf32>
    %43 = vector.shape_cast %42 : vector<16x8xf32> to vector<2x8x8xf32>
    "tpu.trace_start"() <{level = 10 : i32, message = "nqd,nkd->nqk"}> : () -> ()
    %cst_23 = arith.constant dense<0.000000e+00> : vector<2x8x8xf32>
    %44 = tpu.matmul %39, %41, %cst_23 {dimension_numbers = #tpu.dot_dimension_numbers<[2], [2], [1], [1], [0, 0, 0, 1, 1, 1], [0], [0]>} : vector<2x8x8xf32>, vector<2x8x8xf32>, vector<2x8x8xf32> -> vector<2x8x8xf32>
    "tpu.trace_stop"() : () -> ()
    %cst_24 = arith.constant dense<0xFF800000> : vector<2x8xf32>
    %45 = vector.multi_reduction <maximumf>, %44, %cst_24 [2] : vector<2x8x8xf32> to vector<2x8xf32>
    %46 = vector.shape_cast %45 : vector<2x8xf32> to vector<2x8x1xf32>
    %47 = vector.broadcast %46 : vector<2x8x1xf32> to vector<2x8x8xf32>
    %48 = arith.subf %44, %47 : vector<2x8x8xf32>
    %49 = math.exp %48 : vector<2x8x8xf32>
    %cst_25 = arith.constant dense<0.000000e+00> : vector<2x8xf32>
    %50 = vector.multi_reduction <add>, %49, %cst_25 [2] : vector<2x8x8xf32> to vector<2x8xf32>
    %51 = vector.shape_cast %50 : vector<2x8xf32> to vector<2x8x1xf32>
    %52 = tpu.reciprocal %51 {approx = true} : vector<2x8x1xf32> -> vector<2x8x1xf32>
    %53 = vector.broadcast %52 : vector<2x8x1xf32> to vector<2x8x8xf32>
    %54 = arith.mulf %49, %53 : vector<2x8x8xf32>
    "tpu.trace_start"() <{level = 10 : i32, message = "nqk,nkd->nqd"}> : () -> ()
    %cst_26 = arith.constant dense<0.000000e+00> : vector<2x8x8xf32>
    %55 = tpu.matmul %54, %43, %cst_26 {dimension_numbers = #tpu.dot_dimension_numbers<[2], [1], [1], [2], [0, 0, 0, 1, 1, 2], [0], [0]>} : vector<2x8x8xf32>, vector<2x8x8xf32>, vector<2x8x8xf32> -> vector<2x8x8xf32>
    "tpu.trace_stop"() : () -> ()
    %56 = vector.shape_cast %55 : vector<2x8x8xf32> to vector<16x8xf32>
    %c8 = arith.constant 8 : index
    %c0_27 = arith.constant 0 : index
    %57 = vector.load %arg9[%c8, %c0_27] : memref<32x32xf32, #tpu.memory_space<vmem>>, vector<8x32xf32>
    %cst_28 = arith.constant dense<0.000000e+00> : vector<16x32xf32>
    %58 = tpu.matmul %56, %57, %cst_28 {dimension_numbers = #tpu.dot_dimension_numbers<[1], [0], [0], [1], [0, 0, 1, 1], [], []>} : vector<16x8xf32>, vector<8x32xf32>, vector<16x32xf32> -> vector<16x32xf32>
    %59 = arith.addf %37, %58 : vector<16x32xf32>
    %60 = vector.extract_strided_slice %15 {offsets = [0, 16], sizes = [16, 8], strides = [1, 1]} : vector<16x32xf32> to vector<16x8xf32>
    %61 = vector.shape_cast %60 : vector<16x8xf32> to vector<2x8x8xf32>
    %62 = vector.extract_strided_slice %16 {offsets = [0, 16], sizes = [16, 8], strides = [1, 1]} : vector<16x32xf32> to vector<16x8xf32>
    %63 = vector.shape_cast %62 : vector<16x8xf32> to vector<2x8x8xf32>
    %64 = vector.extract_strided_slice %14 {offsets = [0, 16], sizes = [16, 8], strides = [1, 1]} : vector<16x32xf32> to vector<16x8xf32>
    %65 = vector.shape_cast %64 : vector<16x8xf32> to vector<2x8x8xf32>
    "tpu.trace_start"() <{level = 10 : i32, message = "nqd,nkd->nqk"}> : () -> ()
    %cst_29 = arith.constant dense<0.000000e+00> : vector<2x8x8xf32>
    %66 = tpu.matmul %61, %63, %cst_29 {dimension_numbers = #tpu.dot_dimension_numbers<[2], [2], [1], [1], [0, 0, 0, 1, 1, 1], [0], [0]>} : vector<2x8x8xf32>, vector<2x8x8xf32>, vector<2x8x8xf32> -> vector<2x8x8xf32>
    "tpu.trace_stop"() : () -> ()
    %cst_30 = arith.constant dense<0xFF800000> : vector<2x8xf32>
    %67 = vector.multi_reduction <maximumf>, %66, %cst_30 [2] : vector<2x8x8xf32> to vector<2x8xf32>
    %68 = vector.shape_cast %67 : vector<2x8xf32> to vector<2x8x1xf32>
    %69 = vector.broadcast %68 : vector<2x8x1xf32> to vector<2x8x8xf32>
    %70 = arith.subf %66, %69 : vector<2x8x8xf32>
    %71 = math.exp %70 : vector<2x8x8xf32>
    %cst_31 = arith.constant dense<0.000000e+00> : vector<2x8xf32>
    %72 = vector.multi_reduction <add>, %71, %cst_31 [2] : vector<2x8x8xf32> to vector<2x8xf32>
    %73 = vector.shape_cast %72 : vector<2x8xf32> to vector<2x8x1xf32>
    %74 = tpu.reciprocal %73 {approx = true} : vector<2x8x1xf32> -> vector<2x8x1xf32>
    %75 = vector.broadcast %74 : vector<2x8x1xf32> to vector<2x8x8xf32>
    %76 = arith.mulf %71, %75 : vector<2x8x8xf32>
    "tpu.trace_start"() <{level = 10 : i32, message = "nqk,nkd->nqd"}> : () -> ()
    %cst_32 = arith.constant dense<0.000000e+00> : vector<2x8x8xf32>
    %77 = tpu.matmul %76, %65, %cst_32 {dimension_numbers = #tpu.dot_dimension_numbers<[2], [1], [1], [2], [0, 0, 0, 1, 1, 2], [0], [0]>} : vector<2x8x8xf32>, vector<2x8x8xf32>, vector<2x8x8xf32> -> vector<2x8x8xf32>
    "tpu.trace_stop"() : () -> ()
    %78 = vector.shape_cast %77 : vector<2x8x8xf32> to vector<16x8xf32>
    %c16 = arith.constant 16 : index
    %c0_33 = arith.constant 0 : index
    %79 = vector.load %arg9[%c16, %c0_33] : memref<32x32xf32, #tpu.memory_space<vmem>>, vector<8x32xf32>
    %cst_34 = arith.constant dense<0.000000e+00> : vector<16x32xf32>
    %80 = tpu.matmul %78, %79, %cst_34 {dimension_numbers = #tpu.dot_dimension_numbers<[1], [0], [0], [1], [0, 0, 1, 1], [], []>} : vector<16x8xf32>, vector<8x32xf32>, vector<16x32xf32> -> vector<16x32xf32>
    %81 = arith.addf %59, %80 : vector<16x32xf32>
    %82 = vector.extract_strided_slice %15 {offsets = [0, 24], sizes = [16, 8], strides = [1, 1]} : vector<16x32xf32> to vector<16x8xf32>
    %83 = vector.shape_cast %82 : vector<16x8xf32> to vector<2x8x8xf32>
    %84 = vector.extract_strided_slice %16 {offsets = [0, 24], sizes = [16, 8], strides = [1, 1]} : vector<16x32xf32> to vector<16x8xf32>
    %85 = vector.shape_cast %84 : vector<16x8xf32> to vector<2x8x8xf32>
    %86 = vector.extract_strided_slice %14 {offsets = [0, 24], sizes = [16, 8], strides = [1, 1]} : vector<16x32xf32> to vector<16x8xf32>
    %87 = vector.shape_cast %86 : vector<16x8xf32> to vector<2x8x8xf32>
    "tpu.trace_start"() <{level = 10 : i32, message = "nqd,nkd->nqk"}> : () -> ()
    %cst_35 = arith.constant dense<0.000000e+00> : vector<2x8x8xf32>
    %88 = tpu.matmul %83, %85, %cst_35 {dimension_numbers = #tpu.dot_dimension_numbers<[2], [2], [1], [1], [0, 0, 0, 1, 1, 1], [0], [0]>} : vector<2x8x8xf32>, vector<2x8x8xf32>, vector<2x8x8xf32> -> vector<2x8x8xf32>
    "tpu.trace_stop"() : () -> ()
    %cst_36 = arith.constant dense<0xFF800000> : vector<2x8xf32>
    %89 = vector.multi_reduction <maximumf>, %88, %cst_36 [2] : vector<2x8x8xf32> to vector<2x8xf32>
    %90 = vector.shape_cast %89 : vector<2x8xf32> to vector<2x8x1xf32>
    %91 = vector.broadcast %90 : vector<2x8x1xf32> to vector<2x8x8xf32>
    %92 = arith.subf %88, %91 : vector<2x8x8xf32>
    %93 = math.exp %92 : vector<2x8x8xf32>
    %cst_37 = arith.constant dense<0.000000e+00> : vector<2x8xf32>
    %94 = vector.multi_reduction <add>, %93, %cst_37 [2] : vector<2x8x8xf32> to vector<2x8xf32>
    %95 = vector.shape_cast %94 : vector<2x8xf32> to vector<2x8x1xf32>
    %96 = tpu.reciprocal %95 {approx = true} : vector<2x8x1xf32> -> vector<2x8x1xf32>
    %97 = vector.broadcast %96 : vector<2x8x1xf32> to vector<2x8x8xf32>
    %98 = arith.mulf %93, %97 : vector<2x8x8xf32>
    "tpu.trace_start"() <{level = 10 : i32, message = "nqk,nkd->nqd"}> : () -> ()
    %cst_38 = arith.constant dense<0.000000e+00> : vector<2x8x8xf32>
    %99 = tpu.matmul %98, %87, %cst_38 {dimension_numbers = #tpu.dot_dimension_numbers<[2], [1], [1], [2], [0, 0, 0, 1, 1, 2], [0], [0]>} : vector<2x8x8xf32>, vector<2x8x8xf32>, vector<2x8x8xf32> -> vector<2x8x8xf32>
    "tpu.trace_stop"() : () -> ()
    %100 = vector.shape_cast %99 : vector<2x8x8xf32> to vector<16x8xf32>
    %c24 = arith.constant 24 : index
    %c0_39 = arith.constant 0 : index
    %101 = vector.load %arg9[%c24, %c0_39] : memref<32x32xf32, #tpu.memory_space<vmem>>, vector<8x32xf32>
    %cst_40 = arith.constant dense<0.000000e+00> : vector<16x32xf32>
    %102 = tpu.matmul %100, %101, %cst_40 {dimension_numbers = #tpu.dot_dimension_numbers<[1], [0], [0], [1], [0, 0, 1, 1], [], []>} : vector<16x8xf32>, vector<8x32xf32>, vector<16x32xf32> -> vector<16x32xf32>
    %103 = arith.addf %81, %102 : vector<16x32xf32>
    %c0_41 = arith.constant 0 : index
    %c0_42 = arith.constant 0 : index
    %104 = vector.load %arg10[%c0_41, %c0_42] : memref<1x32xf32, #tpu.memory_space<vmem>>, vector<1x32xf32>
    %105 = vector.broadcast %104 : vector<1x32xf32> to vector<16x32xf32>
    %106 = arith.addf %103, %105 : vector<16x32xf32>
    %107 = arith.addf %0, %106 : vector<16x32xf32>
    %cst_43 = arith.constant dense<0.000000e+00> : vector<16xf32>
    %108 = vector.multi_reduction <add>, %107, %cst_43 [1] : vector<16x32xf32> to vector<16xf32>
    %109 = vector.shape_cast %108 : vector<16xf32> to vector<16x1xf32>
    %cst_44 = arith.constant 3.200000e+01 : f32
    %110 = vector.broadcast %cst_44 : f32 to vector<16x1xf32>
    %111 = arith.divf %109, %110 : vector<16x1xf32>
    %112 = vector.broadcast %111 : vector<16x1xf32> to vector<16x32xf32>
    %113 = arith.subf %107, %112 : vector<16x32xf32>
    %114 = arith.mulf %113, %113 : vector<16x32xf32>
    %cst_45 = arith.constant dense<0.000000e+00> : vector<16xf32>
    %115 = vector.multi_reduction <add>, %114, %cst_45 [1] : vector<16x32xf32> to vector<16xf32>
    %116 = vector.shape_cast %115 : vector<16xf32> to vector<16x1xf32>
    %cst_46 = arith.constant 3.200000e+01 : f32
    %117 = vector.broadcast %cst_46 : f32 to vector<16x1xf32>
    %118 = arith.divf %116, %117 : vector<16x1xf32>
    %cst_47 = arith.constant 9.99999974E-6 : f32
    %119 = vector.broadcast %cst_47 : f32 to vector<16x1xf32>
    %120 = arith.addf %118, %119 : vector<16x1xf32>
    %121 = math.rsqrt %120 : vector<16x1xf32>
    %122 = vector.broadcast %121 : vector<16x1xf32> to vector<16x32xf32>
    %123 = arith.mulf %113, %122 : vector<16x32xf32>
    %c0_48 = arith.constant 0 : index
    %c0_49 = arith.constant 0 : index
    %124 = vector.load %arg11[%c0_48, %c0_49] : memref<1x32xf32, #tpu.memory_space<vmem>>, vector<1x32xf32>
    %125 = vector.broadcast %124 : vector<1x32xf32> to vector<16x32xf32>
    %126 = arith.mulf %123, %125 : vector<16x32xf32>
    %c0_50 = arith.constant 0 : index
    %c0_51 = arith.constant 0 : index
    %127 = vector.load %arg12[%c0_50, %c0_51] : memref<1x32xf32, #tpu.memory_space<vmem>>, vector<1x32xf32>
    %128 = vector.broadcast %127 : vector<1x32xf32> to vector<16x32xf32>
    %129 = arith.addf %126, %128 : vector<16x32xf32>
    %130 = arith.addf %129, %1 : vector<16x32xf32>
    %c0_52 = arith.constant 0 : index
    %c0_53 = arith.constant 0 : index
    %131 = vector.load %arg13[%c0_52, %c0_53] : memref<32x32xf32, #tpu.memory_space<vmem>>, vector<32x32xf32>
    %cst_54 = arith.constant dense<0.000000e+00> : vector<16x32xf32>
    %132 = tpu.matmul %130, %131, %cst_54 {dimension_numbers = #tpu.dot_dimension_numbers<[1], [0], [0], [1], [0, 0, 1, 1], [], []>} : vector<16x32xf32>, vector<32x32xf32>, vector<16x32xf32> -> vector<16x32xf32>
    %c0_55 = arith.constant 0 : index
    %c0_56 = arith.constant 0 : index
    %133 = vector.load %arg14[%c0_55, %c0_56] : memref<1x32xf32, #tpu.memory_space<vmem>>, vector<1x32xf32>
    %134 = vector.broadcast %133 : vector<1x32xf32> to vector<16x32xf32>
    %135 = arith.addf %132, %134 : vector<16x32xf32>
    %136 = arith.addf %2, %3 : vector<32x32xf32>
    %c0_57 = arith.constant 0 : index
    %c0_58 = arith.constant 0 : index
    %137 = vector.load %arg15[%c0_57, %c0_58] : memref<32x32xf32, #tpu.memory_space<vmem>>, vector<32x32xf32>
    %cst_59 = arith.constant dense<0.000000e+00> : vector<32x32xf32>
    %138 = tpu.matmul %136, %137, %cst_59 {dimension_numbers = #tpu.dot_dimension_numbers<[1], [0], [0], [1], [0, 0, 1, 1], [], []>} : vector<32x32xf32>, vector<32x32xf32>, vector<32x32xf32> -> vector<32x32xf32>
    %c0_60 = arith.constant 0 : index
    %c0_61 = arith.constant 0 : index
    %139 = vector.load %arg16[%c0_60, %c0_61] : memref<1x32xf32, #tpu.memory_space<vmem>>, vector<1x32xf32>
    %140 = vector.broadcast %139 : vector<1x32xf32> to vector<32x32xf32>
    %141 = arith.addf %138, %140 : vector<32x32xf32>
    %c0_62 = arith.constant 0 : index
    %c0_63 = arith.constant 0 : index
    %142 = vector.load %arg17[%c0_62, %c0_63] : memref<32x32xf32, #tpu.memory_space<vmem>>, vector<32x32xf32>
    %cst_64 = arith.constant dense<0.000000e+00> : vector<32x32xf32>
    %143 = tpu.matmul %2, %142, %cst_64 {dimension_numbers = #tpu.dot_dimension_numbers<[1], [0], [0], [1], [0, 0, 1, 1], [], []>} : vector<32x32xf32>, vector<32x32xf32>, vector<32x32xf32> -> vector<32x32xf32>
    %c0_65 = arith.constant 0 : index
    %c0_66 = arith.constant 0 : index
    %144 = vector.load %arg18[%c0_65, %c0_66] : memref<1x32xf32, #tpu.memory_space<vmem>>, vector<1x32xf32>
    %145 = vector.broadcast %144 : vector<1x32xf32> to vector<32x32xf32>
    %146 = arith.addf %143, %145 : vector<32x32xf32>
    %147 = vector.extract_strided_slice %135 {offsets = [0, 0], sizes = [16, 8], strides = [1, 1]} : vector<16x32xf32> to vector<16x8xf32>
    %148 = vector.shape_cast %147 : vector<16x8xf32> to vector<2x8x8xf32>
    %149 = vector.extract_strided_slice %141 {offsets = [0, 0], sizes = [32, 8], strides = [1, 1]} : vector<32x32xf32> to vector<32x8xf32>
    %150 = vector.shape_cast %149 : vector<32x8xf32> to vector<2x16x8xf32>
    %151 = vector.extract_strided_slice %146 {offsets = [0, 0], sizes = [32, 8], strides = [1, 1]} : vector<32x32xf32> to vector<32x8xf32>
    %152 = vector.shape_cast %151 : vector<32x8xf32> to vector<2x16x8xf32>
    "tpu.trace_start"() <{level = 10 : i32, message = "nqd,nkd->nqk"}> : () -> ()
    %cst_67 = arith.constant dense<0.000000e+00> : vector<2x8x16xf32>
    %153 = tpu.matmul %148, %150, %cst_67 {dimension_numbers = #tpu.dot_dimension_numbers<[2], [2], [1], [1], [0, 0, 0, 1, 1, 1], [0], [0]>} : vector<2x8x8xf32>, vector<2x16x8xf32>, vector<2x8x16xf32> -> vector<2x8x16xf32>
    "tpu.trace_stop"() : () -> ()
    %cst_68 = arith.constant dense<0xFF800000> : vector<2x8xf32>
    %154 = vector.multi_reduction <maximumf>, %153, %cst_68 [2] : vector<2x8x16xf32> to vector<2x8xf32>
    %155 = vector.shape_cast %154 : vector<2x8xf32> to vector<2x8x1xf32>
    %156 = vector.broadcast %155 : vector<2x8x1xf32> to vector<2x8x16xf32>
    %157 = arith.subf %153, %156 : vector<2x8x16xf32>
    %158 = math.exp %157 : vector<2x8x16xf32>
    %cst_69 = arith.constant dense<0.000000e+00> : vector<2x8xf32>
    %159 = vector.multi_reduction <add>, %158, %cst_69 [2] : vector<2x8x16xf32> to vector<2x8xf32>
    %160 = vector.shape_cast %159 : vector<2x8xf32> to vector<2x8x1xf32>
    %161 = tpu.reciprocal %160 {approx = true} : vector<2x8x1xf32> -> vector<2x8x1xf32>
    %162 = vector.broadcast %161 : vector<2x8x1xf32> to vector<2x8x16xf32>
    %163 = arith.mulf %158, %162 : vector<2x8x16xf32>
    "tpu.trace_start"() <{level = 10 : i32, message = "nqk,nkd->nqd"}> : () -> ()
    %cst_70 = arith.constant dense<0.000000e+00> : vector<2x8x8xf32>
    %164 = tpu.matmul %163, %152, %cst_70 {dimension_numbers = #tpu.dot_dimension_numbers<[2], [1], [1], [2], [0, 0, 0, 1, 1, 2], [0], [0]>} : vector<2x8x16xf32>, vector<2x16x8xf32>, vector<2x8x8xf32> -> vector<2x8x8xf32>
    "tpu.trace_stop"() : () -> ()
    %165 = vector.shape_cast %164 : vector<2x8x8xf32> to vector<16x8xf32>
    %c0_71 = arith.constant 0 : index
    %c0_72 = arith.constant 0 : index
    %166 = vector.load %arg19[%c0_71, %c0_72] : memref<32x32xf32, #tpu.memory_space<vmem>>, vector<8x32xf32>
    %cst_73 = arith.constant dense<0.000000e+00> : vector<16x32xf32>
    %167 = tpu.matmul %165, %166, %cst_73 {dimension_numbers = #tpu.dot_dimension_numbers<[1], [0], [0], [1], [0, 0, 1, 1], [], []>} : vector<16x8xf32>, vector<8x32xf32>, vector<16x32xf32> -> vector<16x32xf32>
    %168 = vector.extract_strided_slice %135 {offsets = [0, 8], sizes = [16, 8], strides = [1, 1]} : vector<16x32xf32> to vector<16x8xf32>
    %169 = vector.shape_cast %168 : vector<16x8xf32> to vector<2x8x8xf32>
    %170 = vector.extract_strided_slice %141 {offsets = [0, 8], sizes = [32, 8], strides = [1, 1]} : vector<32x32xf32> to vector<32x8xf32>
    %171 = vector.shape_cast %170 : vector<32x8xf32> to vector<2x16x8xf32>
    %172 = vector.extract_strided_slice %146 {offsets = [0, 8], sizes = [32, 8], strides = [1, 1]} : vector<32x32xf32> to vector<32x8xf32>
    %173 = vector.shape_cast %172 : vector<32x8xf32> to vector<2x16x8xf32>
    "tpu.trace_start"() <{level = 10 : i32, message = "nqd,nkd->nqk"}> : () -> ()
    %cst_74 = arith.constant dense<0.000000e+00> : vector<2x8x16xf32>
    %174 = tpu.matmul %169, %171, %cst_74 {dimension_numbers = #tpu.dot_dimension_numbers<[2], [2], [1], [1], [0, 0, 0, 1, 1, 1], [0], [0]>} : vector<2x8x8xf32>, vector<2x16x8xf32>, vector<2x8x16xf32> -> vector<2x8x16xf32>
    "tpu.trace_stop"() : () -> ()
    %cst_75 = arith.constant dense<0xFF800000> : vector<2x8xf32>
    %175 = vector.multi_reduction <maximumf>, %174, %cst_75 [2] : vector<2x8x16xf32> to vector<2x8xf32>
    %176 = vector.shape_cast %175 : vector<2x8xf32> to vector<2x8x1xf32>
    %177 = vector.broadcast %176 : vector<2x8x1xf32> to vector<2x8x16xf32>
    %178 = arith.subf %174, %177 : vector<2x8x16xf32>
    %179 = math.exp %178 : vector<2x8x16xf32>
    %cst_76 = arith.constant dense<0.000000e+00> : vector<2x8xf32>
    %180 = vector.multi_reduction <add>, %179, %cst_76 [2] : vector<2x8x16xf32> to vector<2x8xf32>
    %181 = vector.shape_cast %180 : vector<2x8xf32> to vector<2x8x1xf32>
    %182 = tpu.reciprocal %181 {approx = true} : vector<2x8x1xf32> -> vector<2x8x1xf32>
    %183 = vector.broadcast %182 : vector<2x8x1xf32> to vector<2x8x16xf32>
    %184 = arith.mulf %179, %183 : vector<2x8x16xf32>
    "tpu.trace_start"() <{level = 10 : i32, message = "nqk,nkd->nqd"}> : () -> ()
    %cst_77 = arith.constant dense<0.000000e+00> : vector<2x8x8xf32>
    %185 = tpu.matmul %184, %173, %cst_77 {dimension_numbers = #tpu.dot_dimension_numbers<[2], [1], [1], [2], [0, 0, 0, 1, 1, 2], [0], [0]>} : vector<2x8x16xf32>, vector<2x16x8xf32>, vector<2x8x8xf32> -> vector<2x8x8xf32>
    "tpu.trace_stop"() : () -> ()
    %186 = vector.shape_cast %185 : vector<2x8x8xf32> to vector<16x8xf32>
    %c8_78 = arith.constant 8 : index
    %c0_79 = arith.constant 0 : index
    %187 = vector.load %arg19[%c8_78, %c0_79] : memref<32x32xf32, #tpu.memory_space<vmem>>, vector<8x32xf32>
    %cst_80 = arith.constant dense<0.000000e+00> : vector<16x32xf32>
    %188 = tpu.matmul %186, %187, %cst_80 {dimension_numbers = #tpu.dot_dimension_numbers<[1], [0], [0], [1], [0, 0, 1, 1], [], []>} : vector<16x8xf32>, vector<8x32xf32>, vector<16x32xf32> -> vector<16x32xf32>
    %189 = arith.addf %167, %188 : vector<16x32xf32>
    %190 = vector.extract_strided_slice %135 {offsets = [0, 16], sizes = [16, 8], strides = [1, 1]} : vector<16x32xf32> to vector<16x8xf32>
    %191 = vector.shape_cast %190 : vector<16x8xf32> to vector<2x8x8xf32>
    %192 = vector.extract_strided_slice %141 {offsets = [0, 16], sizes = [32, 8], strides = [1, 1]} : vector<32x32xf32> to vector<32x8xf32>
    %193 = vector.shape_cast %192 : vector<32x8xf32> to vector<2x16x8xf32>
    %194 = vector.extract_strided_slice %146 {offsets = [0, 16], sizes = [32, 8], strides = [1, 1]} : vector<32x32xf32> to vector<32x8xf32>
    %195 = vector.shape_cast %194 : vector<32x8xf32> to vector<2x16x8xf32>
    "tpu.trace_start"() <{level = 10 : i32, message = "nqd,nkd->nqk"}> : () -> ()
    %cst_81 = arith.constant dense<0.000000e+00> : vector<2x8x16xf32>
    %196 = tpu.matmul %191, %193, %cst_81 {dimension_numbers = #tpu.dot_dimension_numbers<[2], [2], [1], [1], [0, 0, 0, 1, 1, 1], [0], [0]>} : vector<2x8x8xf32>, vector<2x16x8xf32>, vector<2x8x16xf32> -> vector<2x8x16xf32>
    "tpu.trace_stop"() : () -> ()
    %cst_82 = arith.constant dense<0xFF800000> : vector<2x8xf32>
    %197 = vector.multi_reduction <maximumf>, %196, %cst_82 [2] : vector<2x8x16xf32> to vector<2x8xf32>
    %198 = vector.shape_cast %197 : vector<2x8xf32> to vector<2x8x1xf32>
    %199 = vector.broadcast %198 : vector<2x8x1xf32> to vector<2x8x16xf32>
    %200 = arith.subf %196, %199 : vector<2x8x16xf32>
    %201 = math.exp %200 : vector<2x8x16xf32>
    %cst_83 = arith.constant dense<0.000000e+00> : vector<2x8xf32>
    %202 = vector.multi_reduction <add>, %201, %cst_83 [2] : vector<2x8x16xf32> to vector<2x8xf32>
    %203 = vector.shape_cast %202 : vector<2x8xf32> to vector<2x8x1xf32>
    %204 = tpu.reciprocal %203 {approx = true} : vector<2x8x1xf32> -> vector<2x8x1xf32>
    %205 = vector.broadcast %204 : vector<2x8x1xf32> to vector<2x8x16xf32>
    %206 = arith.mulf %201, %205 : vector<2x8x16xf32>
    "tpu.trace_start"() <{level = 10 : i32, message = "nqk,nkd->nqd"}> : () -> ()
    %cst_84 = arith.constant dense<0.000000e+00> : vector<2x8x8xf32>
    %207 = tpu.matmul %206, %195, %cst_84 {dimension_numbers = #tpu.dot_dimension_numbers<[2], [1], [1], [2], [0, 0, 0, 1, 1, 2], [0], [0]>} : vector<2x8x16xf32>, vector<2x16x8xf32>, vector<2x8x8xf32> -> vector<2x8x8xf32>
    "tpu.trace_stop"() : () -> ()
    %208 = vector.shape_cast %207 : vector<2x8x8xf32> to vector<16x8xf32>
    %c16_85 = arith.constant 16 : index
    %c0_86 = arith.constant 0 : index
    %209 = vector.load %arg19[%c16_85, %c0_86] : memref<32x32xf32, #tpu.memory_space<vmem>>, vector<8x32xf32>
    %cst_87 = arith.constant dense<0.000000e+00> : vector<16x32xf32>
    %210 = tpu.matmul %208, %209, %cst_87 {dimension_numbers = #tpu.dot_dimension_numbers<[1], [0], [0], [1], [0, 0, 1, 1], [], []>} : vector<16x8xf32>, vector<8x32xf32>, vector<16x32xf32> -> vector<16x32xf32>
    %211 = arith.addf %189, %210 : vector<16x32xf32>
    %212 = vector.extract_strided_slice %135 {offsets = [0, 24], sizes = [16, 8], strides = [1, 1]} : vector<16x32xf32> to vector<16x8xf32>
    %213 = vector.shape_cast %212 : vector<16x8xf32> to vector<2x8x8xf32>
    %214 = vector.extract_strided_slice %141 {offsets = [0, 24], sizes = [32, 8], strides = [1, 1]} : vector<32x32xf32> to vector<32x8xf32>
    %215 = vector.shape_cast %214 : vector<32x8xf32> to vector<2x16x8xf32>
    %216 = vector.extract_strided_slice %146 {offsets = [0, 24], sizes = [32, 8], strides = [1, 1]} : vector<32x32xf32> to vector<32x8xf32>
    %217 = vector.shape_cast %216 : vector<32x8xf32> to vector<2x16x8xf32>
    "tpu.trace_start"() <{level = 10 : i32, message = "nqd,nkd->nqk"}> : () -> ()
    %cst_88 = arith.constant dense<0.000000e+00> : vector<2x8x16xf32>
    %218 = tpu.matmul %213, %215, %cst_88 {dimension_numbers = #tpu.dot_dimension_numbers<[2], [2], [1], [1], [0, 0, 0, 1, 1, 1], [0], [0]>} : vector<2x8x8xf32>, vector<2x16x8xf32>, vector<2x8x16xf32> -> vector<2x8x16xf32>
    "tpu.trace_stop"() : () -> ()
    %cst_89 = arith.constant dense<0xFF800000> : vector<2x8xf32>
    %219 = vector.multi_reduction <maximumf>, %218, %cst_89 [2] : vector<2x8x16xf32> to vector<2x8xf32>
    %220 = vector.shape_cast %219 : vector<2x8xf32> to vector<2x8x1xf32>
    %221 = vector.broadcast %220 : vector<2x8x1xf32> to vector<2x8x16xf32>
    %222 = arith.subf %218, %221 : vector<2x8x16xf32>
    %223 = math.exp %222 : vector<2x8x16xf32>
    %cst_90 = arith.constant dense<0.000000e+00> : vector<2x8xf32>
    %224 = vector.multi_reduction <add>, %223, %cst_90 [2] : vector<2x8x16xf32> to vector<2x8xf32>
    %225 = vector.shape_cast %224 : vector<2x8xf32> to vector<2x8x1xf32>
    %226 = tpu.reciprocal %225 {approx = true} : vector<2x8x1xf32> -> vector<2x8x1xf32>
    %227 = vector.broadcast %226 : vector<2x8x1xf32> to vector<2x8x16xf32>
    %228 = arith.mulf %223, %227 : vector<2x8x16xf32>
    "tpu.trace_start"() <{level = 10 : i32, message = "nqk,nkd->nqd"}> : () -> ()
    %cst_91 = arith.constant dense<0.000000e+00> : vector<2x8x8xf32>
    %229 = tpu.matmul %228, %217, %cst_91 {dimension_numbers = #tpu.dot_dimension_numbers<[2], [1], [1], [2], [0, 0, 0, 1, 1, 2], [0], [0]>} : vector<2x8x16xf32>, vector<2x16x8xf32>, vector<2x8x8xf32> -> vector<2x8x8xf32>
    "tpu.trace_stop"() : () -> ()
    %230 = vector.shape_cast %229 : vector<2x8x8xf32> to vector<16x8xf32>
    %c24_92 = arith.constant 24 : index
    %c0_93 = arith.constant 0 : index
    %231 = vector.load %arg19[%c24_92, %c0_93] : memref<32x32xf32, #tpu.memory_space<vmem>>, vector<8x32xf32>
    %cst_94 = arith.constant dense<0.000000e+00> : vector<16x32xf32>
    %232 = tpu.matmul %230, %231, %cst_94 {dimension_numbers = #tpu.dot_dimension_numbers<[1], [0], [0], [1], [0, 0, 1, 1], [], []>} : vector<16x8xf32>, vector<8x32xf32>, vector<16x32xf32> -> vector<16x32xf32>
    %233 = arith.addf %211, %232 : vector<16x32xf32>
    %c0_95 = arith.constant 0 : index
    %c0_96 = arith.constant 0 : index
    %234 = vector.load %arg20[%c0_95, %c0_96] : memref<1x32xf32, #tpu.memory_space<vmem>>, vector<1x32xf32>
    %235 = vector.broadcast %234 : vector<1x32xf32> to vector<16x32xf32>
    %236 = arith.addf %233, %235 : vector<16x32xf32>
    %237 = arith.addf %129, %236 : vector<16x32xf32>
    %cst_97 = arith.constant dense<0.000000e+00> : vector<16xf32>
    %238 = vector.multi_reduction <add>, %237, %cst_97 [1] : vector<16x32xf32> to vector<16xf32>
    %239 = vector.shape_cast %238 : vector<16xf32> to vector<16x1xf32>
    %cst_98 = arith.constant 3.200000e+01 : f32
    %240 = vector.broadcast %cst_98 : f32 to vector<16x1xf32>
    %241 = arith.divf %239, %240 : vector<16x1xf32>
    %242 = vector.broadcast %241 : vector<16x1xf32> to vector<16x32xf32>
    %243 = arith.subf %237, %242 : vector<16x32xf32>
    %244 = arith.mulf %243, %243 : vector<16x32xf32>
    %cst_99 = arith.constant dense<0.000000e+00> : vector<16xf32>
    %245 = vector.multi_reduction <add>, %244, %cst_99 [1] : vector<16x32xf32> to vector<16xf32>
    %246 = vector.shape_cast %245 : vector<16xf32> to vector<16x1xf32>
    %cst_100 = arith.constant 3.200000e+01 : f32
    %247 = vector.broadcast %cst_100 : f32 to vector<16x1xf32>
    %248 = arith.divf %246, %247 : vector<16x1xf32>
    %cst_101 = arith.constant 9.99999974E-6 : f32
    %249 = vector.broadcast %cst_101 : f32 to vector<16x1xf32>
    %250 = arith.addf %248, %249 : vector<16x1xf32>
    %251 = math.rsqrt %250 : vector<16x1xf32>
    %252 = vector.broadcast %251 : vector<16x1xf32> to vector<16x32xf32>
    %253 = arith.mulf %243, %252 : vector<16x32xf32>
    %c0_102 = arith.constant 0 : index
    %c0_103 = arith.constant 0 : index
    %254 = vector.load %arg21[%c0_102, %c0_103] : memref<1x32xf32, #tpu.memory_space<vmem>>, vector<1x32xf32>
    %255 = vector.broadcast %254 : vector<1x32xf32> to vector<16x32xf32>
    %256 = arith.mulf %253, %255 : vector<16x32xf32>
    %c0_104 = arith.constant 0 : index
    %c0_105 = arith.constant 0 : index
    %257 = vector.load %arg22[%c0_104, %c0_105] : memref<1x32xf32, #tpu.memory_space<vmem>>, vector<1x32xf32>
    %258 = vector.broadcast %257 : vector<1x32xf32> to vector<16x32xf32>
    %259 = arith.addf %256, %258 : vector<16x32xf32>
    %c0_106 = arith.constant 0 : index
    %c0_107 = arith.constant 0 : index
    %260 = vector.load %arg23[%c0_106, %c0_107] : memref<32x64xf32, #tpu.memory_space<vmem>>, vector<32x64xf32>
    %cst_108 = arith.constant dense<0.000000e+00> : vector<16x64xf32>
    %261 = tpu.matmul %259, %260, %cst_108 {dimension_numbers = #tpu.dot_dimension_numbers<[1], [0], [0], [1], [0, 0, 1, 1], [], []>} : vector<16x32xf32>, vector<32x64xf32>, vector<16x64xf32> -> vector<16x64xf32>
    %c0_109 = arith.constant 0 : index
    %c0_110 = arith.constant 0 : index
    %262 = vector.load %arg24[%c0_109, %c0_110] : memref<1x64xf32, #tpu.memory_space<vmem>>, vector<1x64xf32>
    %263 = vector.broadcast %262 : vector<1x64xf32> to vector<16x64xf32>
    %264 = arith.addf %261, %263 : vector<16x64xf32>
    %cst_111 = arith.constant 0.000000e+00 : f32
    %265 = vector.broadcast %cst_111 : f32 to vector<16x64xf32>
    %266 = arith.maximumf %264, %265 : vector<16x64xf32>
    %c0_112 = arith.constant 0 : index
    %c0_113 = arith.constant 0 : index
    %267 = vector.load %arg25[%c0_112, %c0_113] : memref<64x32xf32, #tpu.memory_space<vmem>>, vector<64x32xf32>
    %cst_114 = arith.constant dense<0.000000e+00> : vector<16x32xf32>
    %268 = tpu.matmul %266, %267, %cst_114 {dimension_numbers = #tpu.dot_dimension_numbers<[1], [0], [0], [1], [0, 0, 1, 1], [], []>} : vector<16x64xf32>, vector<64x32xf32>, vector<16x32xf32> -> vector<16x32xf32>
    %c0_115 = arith.constant 0 : index
    %c0_116 = arith.constant 0 : index
    %269 = vector.load %arg26[%c0_115, %c0_116] : memref<1x32xf32, #tpu.memory_space<vmem>>, vector<1x32xf32>
    %270 = vector.broadcast %269 : vector<1x32xf32> to vector<16x32xf32>
    %271 = arith.addf %268, %270 : vector<16x32xf32>
    %272 = arith.addf %259, %271 : vector<16x32xf32>
    %cst_117 = arith.constant dense<0.000000e+00> : vector<16xf32>
    %273 = vector.multi_reduction <add>, %272, %cst_117 [1] : vector<16x32xf32> to vector<16xf32>
    %274 = vector.shape_cast %273 : vector<16xf32> to vector<16x1xf32>
    %cst_118 = arith.constant 3.200000e+01 : f32
    %275 = vector.broadcast %cst_118 : f32 to vector<16x1xf32>
    %276 = arith.divf %274, %275 : vector<16x1xf32>
    %277 = vector.broadcast %276 : vector<16x1xf32> to vector<16x32xf32>
    %278 = arith.subf %272, %277 : vector<16x32xf32>
    %279 = arith.mulf %278, %278 : vector<16x32xf32>
    %cst_119 = arith.constant dense<0.000000e+00> : vector<16xf32>
    %280 = vector.multi_reduction <add>, %279, %cst_119 [1] : vector<16x32xf32> to vector<16xf32>
    %281 = vector.shape_cast %280 : vector<16xf32> to vector<16x1xf32>
    %cst_120 = arith.constant 3.200000e+01 : f32
    %282 = vector.broadcast %cst_120 : f32 to vector<16x1xf32>
    %283 = arith.divf %281, %282 : vector<16x1xf32>
    %cst_121 = arith.constant 9.99999974E-6 : f32
    %284 = vector.broadcast %cst_121 : f32 to vector<16x1xf32>
    %285 = arith.addf %283, %284 : vector<16x1xf32>
    %286 = math.rsqrt %285 : vector<16x1xf32>
    %287 = vector.broadcast %286 : vector<16x1xf32> to vector<16x32xf32>
    %288 = arith.mulf %278, %287 : vector<16x32xf32>
    %c0_122 = arith.constant 0 : index
    %c0_123 = arith.constant 0 : index
    %289 = vector.load %arg27[%c0_122, %c0_123] : memref<1x32xf32, #tpu.memory_space<vmem>>, vector<1x32xf32>
    %290 = vector.broadcast %289 : vector<1x32xf32> to vector<16x32xf32>
    %291 = arith.mulf %288, %290 : vector<16x32xf32>
    %c0_124 = arith.constant 0 : index
    %c0_125 = arith.constant 0 : index
    %292 = vector.load %arg28[%c0_124, %c0_125] : memref<1x32xf32, #tpu.memory_space<vmem>>, vector<1x32xf32>
    %293 = vector.broadcast %292 : vector<1x32xf32> to vector<16x32xf32>
    %294 = arith.addf %291, %293 : vector<16x32xf32>
    %c0_126 = arith.constant 0 : index
    %c0_127 = arith.constant 0 : index
    %295 = vector.load %arg29[%c0_126, %c0_127] : memref<16x32xf32, #tpu.memory_space<vmem>>, vector<16x32xf32>
    tpu.vector_store %arg29[%c0_126, %c0_127], %294 {strides = array<i32>} : memref<16x32xf32, #tpu.memory_space<vmem>>, vector<16x32xf32>,
    return
  }
  func.func @transform_0(%arg0: i32) -> (i32, i32) {
    %c0_i32 = arith.constant 0 : i32
    %c0_i32_0 = arith.constant 0 : i32
    %c0_i32_1 = arith.constant 0 : i32
    return %c0_i32, %c0_i32_0 : i32, i32
  }
  func.func @transform_1(%arg0: i32) -> (i32, i32) {
    %c0_i32 = arith.constant 0 : i32
    %c0_i32_0 = arith.constant 0 : i32
    %c0_i32_1 = arith.constant 0 : i32
    return %c0_i32, %c0_i32_0 : i32, i32
  }
  func.func @transform_2(%arg0: i32) -> (i32, i32) {
    %c0_i32 = arith.constant 0 : i32
    %c0_i32_0 = arith.constant 0 : i32
    %c0_i32_1 = arith.constant 0 : i32
    return %c0_i32, %c0_i32_0 : i32, i32
  }
  func.func @transform_3(%arg0: i32) -> (i32, i32) {
    %c0_i32 = arith.constant 0 : i32
    %c0_i32_0 = arith.constant 0 : i32
    %c0_i32_1 = arith.constant 0 : i32
    return %c0_i32, %c0_i32_0 : i32, i32
  }
  func.func @transform_4(%arg0: i32) -> (i32, i32) {
    %c0_i32 = arith.constant 0 : i32
    %c0_i32_0 = arith.constant 0 : i32
    %c0_i32_1 = arith.constant 0 : i32
    return %c0_i32, %c0_i32_0 : i32, i32
  }
  func.func @transform_5(%arg0: i32) -> (i32, i32) {
    %c0_i32 = arith.constant 0 : i32
    %c0_i32_0 = arith.constant 0 : i32
    %c0_i32_1 = arith.constant 0 : i32
    return %c0_i32, %c0_i32_0 : i32, i32
  }
  func.func @transform_6(%arg0: i32) -> (i32, i32) {
    %c0_i32 = arith.constant 0 : i32
    %c0_i32_0 = arith.constant 0 : i32
    %c0_i32_1 = arith.constant 0 : i32
    return %c0_i32, %c0_i32_0 : i32, i32
  }
  func.func @transform_7(%arg0: i32) -> (i32, i32) {
    %c0_i32 = arith.constant 0 : i32
    %c0_i32_0 = arith.constant 0 : i32
    %c0_i32_1 = arith.constant 0 : i32
    return %c0_i32, %c0_i32_0 : i32, i32
  }
  func.func @transform_8(%arg0: i32) -> (i32, i32) {
    %c0_i32 = arith.constant 0 : i32
    %c0_i32_0 = arith.constant 0 : i32
    %c0_i32_1 = arith.constant 0 : i32
    return %c0_i32, %c0_i32_0 : i32, i32
  }
  func.func @transform_9(%arg0: i32) -> (i32, i32) {
    %c0_i32 = arith.constant 0 : i32
    %c0_i32_0 = arith.constant 0 : i32
    %c0_i32_1 = arith.constant 0 : i32
    return %c0_i32, %c0_i32_0 : i32, i32
  }
  func.func @transform_10(%arg0: i32) -> (i32, i32) {
    %c0_i32 = arith.constant 0 : i32
    %c0_i32_0 = arith.constant 0 : i32
    %c0_i32_1 = arith.constant 0 : i32
    return %c0_i32, %c0_i32_0 : i32, i32
  }
  func.func @transform_11(%arg0: i32) -> (i32, i32) {
    %c0_i32 = arith.constant 0 : i32
    %c0_i32_0 = arith.constant 0 : i32
    %c0_i32_1 = arith.constant 0 : i32
    return %c0_i32, %c0_i32_0 : i32, i32
  }
  func.func @transform_12(%arg0: i32) -> (i32, i32) {
    %c0_i32 = arith.constant 0 : i32
    %c0_i32_0 = arith.constant 0 : i32
    %c0_i32_1 = arith.constant 0 : i32
    return %c0_i32, %c0_i32_0 : i32, i32
  }
  func.func @transform_13(%arg0: i32) -> (i32, i32) {
    %c0_i32 = arith.constant 0 : i32
    %c0_i32_0 = arith.constant 0 : i32
    %c0_i32_1 = arith.constant 0 : i32
    return %c0_i32, %c0_i32_0 : i32, i32
  }
  func.func @transform_14(%arg0: i32) -> (i32, i32) {
    %c0_i32 = arith.constant 0 : i32
    %c0_i32_0 = arith.constant 0 : i32
    %c0_i32_1 = arith.constant 0 : i32
    return %c0_i32, %c0_i32_0 : i32, i32
  }
  func.func @transform_15(%arg0: i32) -> (i32, i32) {
    %c0_i32 = arith.constant 0 : i32
    %c0_i32_0 = arith.constant 0 : i32
    %c0_i32_1 = arith.constant 0 : i32
    return %c0_i32, %c0_i32_0 : i32, i32
  }
  func.func @transform_16(%arg0: i32) -> (i32, i32) {
    %c0_i32 = arith.constant 0 : i32
    %c0_i32_0 = arith.constant 0 : i32
    %c0_i32_1 = arith.constant 0 : i32
    return %c0_i32, %c0_i32_0 : i32, i32
  }
  func.func @transform_17(%arg0: i32) -> (i32, i32) {
    %c0_i32 = arith.constant 0 : i32
    %c0_i32_0 = arith.constant 0 : i32
    %c0_i32_1 = arith.constant 0 : i32
    return %c0_i32, %c0_i32_0 : i32, i32
  }
  func.func @transform_18(%arg0: i32) -> (i32, i32) {
    %c0_i32 = arith.constant 0 : i32
    %c0_i32_0 = arith.constant 0 : i32
    %c0_i32_1 = arith.constant 0 : i32
    return %c0_i32, %c0_i32_0 : i32, i32
  }
  func.func @transform_19(%arg0: i32) -> (i32, i32) {
    %c0_i32 = arith.constant 0 : i32
    %c0_i32_0 = arith.constant 0 : i32
    %c0_i32_1 = arith.constant 0 : i32
    return %c0_i32, %c0_i32_0 : i32, i32
  }
  func.func @transform_20(%arg0: i32) -> (i32, i32) {
    %c0_i32 = arith.constant 0 : i32
    %c0_i32_0 = arith.constant 0 : i32
    %c0_i32_1 = arith.constant 0 : i32
    return %c0_i32, %c0_i32_0 : i32, i32
  }
  func.func @transform_21(%arg0: i32) -> (i32, i32) {
    %c0_i32 = arith.constant 0 : i32
    %c0_i32_0 = arith.constant 0 : i32
    %c0_i32_1 = arith.constant 0 : i32
    return %c0_i32, %c0_i32_0 : i32, i32
  }
  func.func @transform_22(%arg0: i32) -> (i32, i32) {
    %c0_i32 = arith.constant 0 : i32
    %c0_i32_0 = arith.constant 0 : i32
    %c0_i32_1 = arith.constant 0 : i32
    return %c0_i32, %c0_i32_0 : i32, i32
  }
  func.func @transform_23(%arg0: i32) -> (i32, i32) {
    %c0_i32 = arith.constant 0 : i32
    %c0_i32_0 = arith.constant 0 : i32
    %c0_i32_1 = arith.constant 0 : i32
    return %c0_i32, %c0_i32_0 : i32, i32
  }
  func.func @transform_24(%arg0: i32) -> (i32, i32) {
    %c0_i32 = arith.constant 0 : i32
    %c0_i32_0 = arith.constant 0 : i32
    %c0_i32_1 = arith.constant 0 : i32
    return %c0_i32, %c0_i32_0 : i32, i32
  }
  func.func @transform_25(%arg0: i32) -> (i32, i32) {
    %c0_i32 = arith.constant 0 : i32
    %c0_i32_0 = arith.constant 0 : i32
    %c0_i32_1 = arith.constant 0 : i32
    return %c0_i32, %c0_i32_0 : i32, i32
  }
  func.func @transform_26(%arg0: i32) -> (i32, i32) {
    %c0_i32 = arith.constant 0 : i32
    %c0_i32_0 = arith.constant 0 : i32
    %c0_i32_1 = arith.constant 0 : i32
    return %c0_i32, %c0_i32_0 : i32, i32
  }
  func.func @transform_27(%arg0: i32) -> (i32, i32) {
    %c0_i32 = arith.constant 0 : i32
    %c0_i32_0 = arith.constant 0 : i32
    %c0_i32_1 = arith.constant 0 : i32
    return %c0_i32, %c0_i32_0 : i32, i32
  }
  func.func @transform_28(%arg0: i32) -> (i32, i32) {
    %c0_i32 = arith.constant 0 : i32
    %c0_i32_0 = arith.constant 0 : i32
    %c0_i32_1 = arith.constant 0 : i32
    return %c0_i32, %c0_i32_0 : i32, i32
  }
}

</mosaic_0001>

<llo_original>
// kernel: tpu_custom_call.1
$region0: #{tpu_custom_call.1}
  #allocation0 [shape = 'u32[]', space=smem, size = 0x4, offset = 0x4, fixed_abs, tag = 'smem constant byte address 0x4 - core index']
  #allocation1 [shape = 'u32[72,128]{1,0:T(1,128)}', space=vmem, size = 0x9000, scoped, tag = 'internal scratch']
  %s0 = inlined_call_operand.hbm [shape: f32[16,32], index: 0, kind: input, shape index: {}]
  %s1 = inlined_call_operand.hbm [shape: f32[16,32], index: 1, kind: input, shape index: {}]
  %s2 = inlined_call_operand.vmem [shape: f32[32,32], index: 2, kind: input, shape index: {}]
  %s3 = inlined_call_operand.vmem [shape: f32[32,32], index: 3, kind: input, shape index: {}]
  %s4 = inlined_call_operand.vmem [shape: f32[32,64], index: 4, kind: input, shape index: {}]
  %s5 = inlined_call_operand.vmem [shape: f32[1,64], index: 5, kind: input, shape index: {}]
  %s6 = inlined_call_operand.hbm [shape: f32[32,32], index: 6, kind: input, shape index: {}]
  %s7 = inlined_call_operand.vmem [shape: f32[1,32], index: 7, kind: input, shape index: {}]
  %s8 = inlined_call_operand.hbm [shape: f32[32,32], index: 8, kind: input, shape index: {}]
  %s9 = inlined_call_operand.vmem [shape: f32[1,32], index: 9, kind: input, shape index: {}]
  %s10 = inlined_call_operand.vmem [shape: f32[1,32], index: 10, kind: input, shape index: {}]
  %s11 = inlined_call_operand.vmem [shape: f32[1,32], index: 11, kind: input, shape index: {}]
  %s12 = inlined_call_operand.hbm [shape: f32[32,32], index: 12, kind: input, shape index: {}]
  %s13 = inlined_call_operand.vmem [shape: f32[1,32], index: 13, kind: input, shape index: {}]
  %s14 = inlined_call_operand.hbm [shape: f32[32,32], index: 14, kind: input, shape index: {}]
  %s15 = inlined_call_operand.vmem [shape: f32[1,32], index: 15, kind: input, shape index: {}]
  %s16 = inlined_call_operand.hbm [shape: f32[32,32], index: 16, kind: input, shape index: {}]
  %s17 = inlined_call_operand.vmem [shape: f32[1,32], index: 17, kind: input, shape index: {}]
  %s18 = inlined_call_operand.hbm [shape: f32[32,32], index: 18, kind: input, shape index: {}]
  %s19 = inlined_call_operand.vmem [shape: f32[1,32], index: 19, kind: input, shape index: {}]
  %s20 = inlined_call_operand.vmem [shape: f32[1,32], index: 20, kind: input, shape index: {}]
  %s21 = inlined_call_operand.vmem [shape: f32[1,32], index: 21, kind: input, shape index: {}]
  %s22 = inlined_call_operand.hbm [shape: f32[32,64], index: 22, kind: input, shape index: {}]
  %s23 = inlined_call_operand.vmem [shape: f32[1,64], index: 23, kind: input, shape index: {}]
  %s24 = inlined_call_operand.vmem [shape: f32[64,32], index: 24, kind: input, shape index: {}]
  %s25 = inlined_call_operand.vmem [shape: f32[1,32], index: 25, kind: input, shape index: {}]
  %s26 = inlined_call_operand.vmem [shape: f32[1,32], index: 26, kind: input, shape index: {}]
  %s27 = inlined_call_operand.vmem [shape: f32[1,32], index: 27, kind: input, shape index: {}]
  %s28 = inlined_call_operand.hbm [shape: f32[16,32], index: 28, kind: output, shape index: {}]
  %s29 = sld [smem:[#allocation0]]
  $region158: #{tpu_custom_call.1} parent=0
    _
  %s31 = ssub.s32 1, %s29
  %s32 = scalar_select 0, %s31, %s29
  $region1: #{tpu_custom_call.1} parent=0
    #allocation2 [shape = 'u8[8192]{0}', space=vmem, size = 0x2000, scoped, tag = 'input window, operand 0, single buffered']
    #allocation3 [shape = 's32[1]{0}', space=sflag, size = 0x4, scoped, tag = 'scoped memory for tpu_custom_call.1']
    #allocation4 [shape = 's32[1]{0}', space=sflag, size = 0x4, scoped, tag = 'scoped memory for tpu_custom_call.1']
    #allocation5 [shape = 'u8[8192]{0}', space=vmem, size = 0x2000, scoped, tag = 'input window, operand 1, single buffered']
    #allocation6 [shape = 's32[1]{0}', space=sflag, size = 0x4, scoped, tag = 'scoped memory for tpu_custom_call.1']
    #allocation7 [shape = 'u8[16384]{0}', space=vmem, size = 0x4000, scoped, tag = 'input window, operand 6, single buffered']
    #allocation8 [shape = 'u8[16384]{0}', space=vmem, size = 0x4000, scoped, tag = 'input window, operand 8, single buffered']
    #allocation9 [shape = 's32[1]{0}', space=sflag, size = 0x4, scoped, tag = 'scoped memory for tpu_custom_call.1']
    #allocation10 [shape = 'u8[16384]{0}', space=vmem, size = 0x4000, scoped, tag = 'input window, operand 12, single buffered']
    #allocation11 [shape = 'u8[16384]{0}', space=vmem, size = 0x4000, scoped, tag = 'input window, operand 14, single buffered']
    #allocation12 [shape = 's32[1]{0}', space=sflag, size = 0x4, scoped, tag = 'scoped memory for tpu_custom_call.1']
    #allocation13 [shape = 'u8[16384]{0}', space=vmem, size = 0x4000, scoped, tag = 'input window, operand 16, single buffered']
    #allocation14 [shape = 'u8[16384]{0}', space=vmem, size = 0x4000, scoped, tag = 'input window, operand 18, single buffered']
    #allocation15 [shape = 's32[1]{0}', space=sflag, size = 0x4, scoped, tag = 'scoped memory for tpu_custom_call.1']
    #allocation16 [shape = 'u8[16384]{0}', space=vmem, size = 0x4000, scoped, tag = 'input window, operand 22, single buffered']
    #allocation17 [shape = 'u8[8192]{0}', space=vmem, size = 0x2000, scoped, tag = 'output window, operand 0, single buffered']
    %33 = vsyncpa [#allocation3], 0
    %34 = vsyncpa [#allocation6], 0
    %35 = vsyncpa [#allocation9], 0
    %36 = vsyncpa [#allocation12], 0
    %37 = vsyncpa [#allocation15], 0
    %38 = vsyncpa [#allocation4], 0
    // Predicated region
    $region2: #{tpu_custom_call.1} parent=1 // pred_check
      _
    $region3: #{tpu_custom_call.1} parent=1 // pred_check_branch
      %40 = sbr.rel (0) target = $region5
    $region4: #{tpu_custom_call.1} parent=1 // pred_region
      %42 = vsyncadd [#allocation3], 0
      %s43 = sshll.u32 %s0, 4
      %s44 = int_to_ptr.hbm [resolvable:$true] %s43
      %s45 = sshll.u32 [#allocation2], 4
      %s46 = int_to_ptr.vmem [resolvable:$true] %s45
      %51 = dma.hbm_to_vmem [thread:$0]  %s44, 256, %s46, [#allocation3], 128, 128, 8
    $region5: #{tpu_custom_call.1} parent=1 // pred_fallthru
      _
    // Predicated region
    $region6: #{tpu_custom_call.1} parent=1 // pred_check
      _
    $region7: #{tpu_custom_call.1} parent=1 // pred_check_branch
      %53 = sbr.rel (0) target = $region9
    $region8: #{tpu_custom_call.1} parent=1 // pred_region
      %55 = vsyncadd [#allocation6], 0
      %s56 = sshll.u32 %s1, 4
      %s57 = int_to_ptr.hbm [resolvable:$true] %s56
      %s58 = sshll.u32 [#allocation5], 4
      %s59 = int_to_ptr.vmem [resolvable:$true] %s58
      %64 = dma.hbm_to_vmem [thread:$0]  %s57, 256, %s59, [#allocation6], 128, 128, 8
    $region9: #{tpu_custom_call.1} parent=1 // pred_fallthru
      _
    // Predicated region
    $region10: #{tpu_custom_call.1} parent=1 // pred_check
      _
    $region11: #{tpu_custom_call.1} parent=1 // pred_check_branch
      %66 = sbr.rel (0) target = $region13
    $region12: #{tpu_custom_call.1} parent=1 // pred_region
      _
    $region13: #{tpu_custom_call.1} parent=1 // pred_fallthru
      _
    // Predicated region
    $region14: #{tpu_custom_call.1} parent=1 // pred_check
      _
    $region15: #{tpu_custom_call.1} parent=1 // pred_check_branch
      %68 = sbr.rel (0) target = $region17
    $region16: #{tpu_custom_call.1} parent=1 // pred_region
      _
    $region17: #{tpu_custom_call.1} parent=1 // pred_fallthru
      _
    // Predicated region
    $region18: #{tpu_custom_call.1} parent=1 // pred_check
      _
    $region19: #{tpu_custom_call.1} parent=1 // pred_check_branch
      %70 = sbr.rel (0) target = $region21
    $region20: #{tpu_custom_call.1} parent=1 // pred_region
      _
    $region21: #{tpu_custom_call.1} parent=1 // pred_fallthru
      _
    // Predicated region
    $region22: #{tpu_custom_call.1} parent=1 // pred_check
      _
    $region23: #{tpu_custom_call.1} parent=1 // pred_check_branch
      %72 = sbr.rel (0) target = $region25
    $region24: #{tpu_custom_call.1} parent=1 // pred_region
      _
    $region25: #{tpu_custom_call.1} parent=1 // pred_fallthru
      _
    // Predicated region
    $region26: #{tpu_custom_call.1} parent=1 // pred_check
      _
    $region27: #{tpu_custom_call.1} parent=1 // pred_check_branch
      %74 = sbr.rel (0) target = $region29
    $region28: #{tpu_custom_call.1} parent=1 // pred_region
      %76 = vsyncadd [#allocation6], 0
      %s77 = sshll.u32 %s6, 4
      %s78 = int_to_ptr.hbm [resolvable:$true] %s77
      %s79 = sshll.u32 [#allocation7], 4
      %s80 = int_to_ptr.vmem [resolvable:$true] %s79
      %85 = dma.hbm_to_vmem [thread:$0]  %s78, 512, %s80, [#allocation6], 128, 128, 8
    $region29: #{tpu_custom_call.1} parent=1 // pred_fallthru
      _
    // Predicated region
    $region30: #{tpu_custom_call.1} parent=1 // pred_check
      _
    $region31: #{tpu_custom_call.1} parent=1 // pred_check_branch
      %87 = sbr.rel (0) target = $region33
    $region32: #{tpu_custom_call.1} parent=1 // pred_region
      _
    $region33: #{tpu_custom_call.1} parent=1 // pred_fallthru
      _
    // Predicated region
    $region34: #{tpu_custom_call.1} parent=1 // pred_check
      _
    $region35: #{tpu_custom_call.1} parent=1 // pred_check_branch
      %89 = sbr.rel (0) target = $region37
    $region36: #{tpu_custom_call.1} parent=1 // pred_region
      %91 = vsyncadd [#allocation9], 0
      %s92 = sshll.u32 %s8, 4
      %s93 = int_to_ptr.hbm [resolvable:$true] %s92
      %s94 = sshll.u32 [#allocation8], 4
      %s95 = int_to_ptr.vmem [resolvable:$true] %s94
      %100 = dma.hbm_to_vmem [thread:$0]  %s93, 512, %s95, [#allocation9], 128, 128, 8
    $region37: #{tpu_custom_call.1} parent=1 // pred_fallthru
      _
    // Predicated region
    $region38: #{tpu_custom_call.1} parent=1 // pred_check
      _
    $region39: #{tpu_custom_call.1} parent=1 // pred_check_branch
      %102 = sbr.rel (0) target = $region41
    $region40: #{tpu_custom_call.1} parent=1 // pred_region
      _
    $region41: #{tpu_custom_call.1} parent=1 // pred_fallthru
      _
    // Predicated region
    $region42: #{tpu_custom_call.1} parent=1 // pred_check
      _
    $region43: #{tpu_custom_call.1} parent=1 // pred_check_branch
      %104 = sbr.rel (0) target = $region45
    $region44: #{tpu_custom_call.1} parent=1 // pred_region
      _
    $region45: #{tpu_custom_call.1} parent=1 // pred_fallthru
      _
    // Predicated region
    $region46: #{tpu_custom_call.1} parent=1 // pred_check
      _
    $region47: #{tpu_custom_call.1} parent=1 // pred_check_branch
      %106 = sbr.rel (0) target = $region49
    $region48: #{tpu_custom_call.1} parent=1 // pred_region
      _
    $region49: #{tpu_custom_call.1} parent=1 // pred_fallthru
      _
    // Predicated region
    $region50: #{tpu_custom_call.1} parent=1 // pred_check
      _
    $region51: #{tpu_custom_call.1} parent=1 // pred_check_branch
      %108 = sbr.rel (0) target = $region53
    $region52: #{tpu_custom_call.1} parent=1 // pred_region
      %110 = vsyncadd [#allocation9], 0
      %s111 = sshll.u32 %s12, 4
      %s112 = int_to_ptr.hbm [resolvable:$true] %s111
      %s113 = sshll.u32 [#allocation10], 4
      %s114 = int_to_ptr.vmem [resolvable:$true] %s113
      %119 = dma.hbm_to_vmem [thread:$0]  %s112, 512, %s114, [#allocation9], 128, 128, 8
    $region53: #{tpu_custom_call.1} parent=1 // pred_fallthru
      _
    // Predicated region
    $region54: #{tpu_custom_call.1} parent=1 // pred_check
      _
    $region55: #{tpu_custom_call.1} parent=1 // pred_check_branch
      %121 = sbr.rel (0) target = $region57
    $region56: #{tpu_custom_call.1} parent=1 // pred_region
      _
    $region57: #{tpu_custom_call.1} parent=1 // pred_fallthru
      _
    // Predicated region
    $region58: #{tpu_custom_call.1} parent=1 // pred_check
      _
    $region59: #{tpu_custom_call.1} parent=1 // pred_check_branch
      %123 = sbr.rel (0) target = $region61
    $region60: #{tpu_custom_call.1} parent=1 // pred_region
      %125 = vsyncadd [#allocation12], 0
      %s126 = sshll.u32 %s14, 4
      %s127 = int_to_ptr.hbm [resolvable:$true] %s126
      %s128 = sshll.u32 [#allocation11], 4
      %s129 = int_to_ptr.vmem [resolvable:$true] %s128
      %134 = dma.hbm_to_vmem [thread:$0]  %s127, 512, %s129, [#allocation12], 128, 128, 8
    $region61: #{tpu_custom_call.1} parent=1 // pred_fallthru
      _
    // Predicated region
    $region62: #{tpu_custom_call.1} parent=1 // pred_check
      _
    $region63: #{tpu_custom_call.1} parent=1 // pred_check_branch
      %136 = sbr.rel (0) target = $region65
    $region64: #{tpu_custom_call.1} parent=1 // pred_region
      _
    $region65: #{tpu_custom_call.1} parent=1 // pred_fallthru
      _
    // Predicated region
    $region66: #{tpu_custom_call.1} parent=1 // pred_check
      _
    $region67: #{tpu_custom_call.1} parent=1 // pred_check_branch
      %138 = sbr.rel (0) target = $region69
    $region68: #{tpu_custom_call.1} parent=1 // pred_region
      %140 = vsyncadd [#allocation12], 0
      %s141 = sshll.u32 %s16, 4
      %s142 = int_to_ptr.hbm [resolvable:$true] %s141
      %s143 = sshll.u32 [#allocation13], 4
      %s144 = int_to_ptr.vmem [resolvable:$true] %s143
      %149 = dma.hbm_to_vmem [thread:$0]  %s142, 512, %s144, [#allocation12], 128, 128, 8
    $region69: #{tpu_custom_call.1} parent=1 // pred_fallthru
      _
    // Predicated region
    $region70: #{tpu_custom_call.1} parent=1 // pred_check
      _
    $region71: #{tpu_custom_call.1} parent=1 // pred_check_branch
      %151 = sbr.rel (0) target = $region73
    $region72: #{tpu_custom_call.1} parent=1 // pred_region
      _
    $region73: #{tpu_custom_call.1} parent=1 // pred_fallthru
      _
    // Predicated region
    $region74: #{tpu_custom_call.1} parent=1 // pred_check
      _
    $region75: #{tpu_custom_call.1} parent=1 // pred_check_branch
      %153 = sbr.rel (0) target = $region77
    $region76: #{tpu_custom_call.1} parent=1 // pred_region
      %155 = vsyncadd [#allocation15], 0
      %s156 = sshll.u32 %s18, 4
      %s157 = int_to_ptr.hbm [resolvable:$true] %s156
      %s158 = sshll.u32 [#allocation14], 4
      %s159 = int_to_ptr.vmem [resolvable:$true] %s158
      %164 = dma.hbm_to_vmem [thread:$0]  %s157, 512, %s159, [#allocation15], 128, 128, 8
    $region77: #{tpu_custom_call.1} parent=1 // pred_fallthru
      _
    // Predicated region
    $region78: #{tpu_custom_call.1} parent=1 // pred_check
      _
    $region79: #{tpu_custom_call.1} parent=1 // pred_check_branch
      %166 = sbr.rel (0) target = $region81
    $region80: #{tpu_custom_call.1} parent=1 // pred_region
      _
    $region81: #{tpu_custom_call.1} parent=1 // pred_fallthru
      _
    // Predicated region
    $region82: #{tpu_custom_call.1} parent=1 // pred_check
      _
    $region83: #{tpu_custom_call.1} parent=1 // pred_check_branch
      %168 = sbr.rel (0) target = $region85
    $region84: #{tpu_custom_call.1} parent=1 // pred_region
      _
    $region85: #{tpu_custom_call.1} parent=1 // pred_fallthru
      _
    // Predicated region
    $region86: #{tpu_custom_call.1} parent=1 // pred_check
      _
    $region87: #{tpu_custom_call.1} parent=1 // pred_check_branch
      %170 = sbr.rel (0) target = $region89
    $region88: #{tpu_custom_call.1} parent=1 // pred_region
      _
    $region89: #{tpu_custom_call.1} parent=1 // pred_fallthru
      _
    // Predicated region
    $region90: #{tpu_custom_call.1} parent=1 // pred_check
      _
    $region91: #{tpu_custom_call.1} parent=1 // pred_check_branch
      %172 = sbr.rel (0) target = $region93
    $region92: #{tpu_custom_call.1} parent=1 // pred_region
      %174 = vsyncadd [#allocation15], 0
      %s175 = sshll.u32 %s22, 4
      %s176 = int_to_ptr.hbm [resolvable:$true] %s175
      %s177 = sshll.u32 [#allocation16], 4
      %s178 = int_to_ptr.vmem [resolvable:$true] %s177
      %183 = dma.hbm_to_vmem [thread:$0]  %s176, 512, %s178, [#allocation15], 128, 128, 8
    $region93: #{tpu_custom_call.1} parent=1 // pred_fallthru
      _
    // Predicated region
    $region94: #{tpu_custom_call.1} parent=1 // pred_check
      _
    $region95: #{tpu_custom_call.1} parent=1 // pred_check_branch
      %185 = sbr.rel (0) target = $region97
    $region96: #{tpu_custom_call.1} parent=1 // pred_region
      _
    $region97: #{tpu_custom_call.1} parent=1 // pred_fallthru
      _
    // Predicated region
    $region98: #{tpu_custom_call.1} parent=1 // pred_check
      _
    $region99: #{tpu_custom_call.1} parent=1 // pred_check_branch
      %187 = sbr.rel (0) target = $region101
    $region100: #{tpu_custom_call.1} parent=1 // pred_region
      _
    $region101: #{tpu_custom_call.1} parent=1 // pred_fallthru
      _
    // Predicated region
    $region102: #{tpu_custom_call.1} parent=1 // pred_check
      _
    $region103: #{tpu_custom_call.1} parent=1 // pred_check_branch
      %189 = sbr.rel (0) target = $region105
    $region104: #{tpu_custom_call.1} parent=1 // pred_region
      _
    $region105: #{tpu_custom_call.1} parent=1 // pred_fallthru
      _
    // Predicated region
    $region106: #{tpu_custom_call.1} parent=1 // pred_check
      _
    $region107: #{tpu_custom_call.1} parent=1 // pred_check_branch
      %191 = sbr.rel (0) target = $region109
    $region108: #{tpu_custom_call.1} parent=1 // pred_region
      _
    $region109: #{tpu_custom_call.1} parent=1 // pred_fallthru
      _
    // Predicated region
    $region110: #{tpu_custom_call.1} parent=1 // pred_check
      _
    $region111: #{tpu_custom_call.1} parent=1 // pred_check_branch
      %193 = sbr.rel (0) target = $region113
    $region112: #{tpu_custom_call.1} parent=1 // pred_region
      _
    $region113: #{tpu_custom_call.1} parent=1 // pred_fallthru
      _
    // Predicated region
    $region114: #{tpu_custom_call.1} parent=1 // pred_check
      _
    $region115: #{tpu_custom_call.1} parent=1 // pred_check_branch
      %195 = sbr.rel (0) target = $region117
    $region116: #{tpu_custom_call.1} parent=1 // pred_region
      %197 = dma.done [#allocation3], 256
    $region117: #{tpu_custom_call.1} parent=1 // pred_fallthru
      _
    // Predicated region
    $region118: #{tpu_custom_call.1} parent=1 // pred_check
      _
    $region119: #{tpu_custom_call.1} parent=1 // pred_check_branch
      %199 = sbr.rel (0) target = $region121
    $region120: #{tpu_custom_call.1} parent=1 // pred_region
      %201 = dma.done [#allocation6], 256
    $region121: #{tpu_custom_call.1} parent=1 // pred_fallthru
      _
    // Predicated region
    $region122: #{tpu_custom_call.1} parent=1 // pred_check
      _
    $region123: #{tpu_custom_call.1} parent=1 // pred_check_branch
      %203 = sbr.rel (0) target = $region125
    $region124: #{tpu_custom_call.1} parent=1 // pred_region
      %205 = dma.done [#allocation6], 512
    $region125: #{tpu_custom_call.1} parent=1 // pred_fallthru
      _
    // Predicated region
    $region126: #{tpu_custom_call.1} parent=1 // pred_check
      _
    $region127: #{tpu_custom_call.1} parent=1 // pred_check_branch
      %207 = sbr.rel (0) target = $region129
    $region128: #{tpu_custom_call.1} parent=1 // pred_region
      %209 = dma.done [#allocation9], 512
    $region129: #{tpu_custom_call.1} parent=1 // pred_fallthru
      _
    // Predicated region
    $region130: #{tpu_custom_call.1} parent=1 // pred_check
      _
    $region131: #{tpu_custom_call.1} parent=1 // pred_check_branch
      %211 = sbr.rel (0) target = $region133
    $region132: #{tpu_custom_call.1} parent=1 // pred_region
      %213 = dma.done [#allocation9], 512
    $region133: #{tpu_custom_call.1} parent=1 // pred_fallthru
      _
    // Predicated region
    $region134: #{tpu_custom_call.1} parent=1 // pred_check
      _
    $region135: #{tpu_custom_call.1} parent=1 // pred_check_branch
      %215 = sbr.rel (0) target = $region137
    $region136: #{tpu_custom_call.1} parent=1 // pred_region
      %217 = dma.done [#allocation12], 512
    $region137: #{tpu_custom_call.1} parent=1 // pred_fallthru
      _
    // Predicated region
    $region138: #{tpu_custom_call.1} parent=1 // pred_check
      _
    $region139: #{tpu_custom_call.1} parent=1 // pred_check_branch
      %219 = sbr.rel (0) target = $region141
    $region140: #{tpu_custom_call.1} parent=1 // pred_region
      %221 = dma.done [#allocation12], 512
    $region141: #{tpu_custom_call.1} parent=1 // pred_fallthru
      _
    // Predicated region
    $region142: #{tpu_custom_call.1} parent=1 // pred_check
      _
    $region143: #{tpu_custom_call.1} parent=1 // pred_check_branch
      %223 = sbr.rel (0) target = $region145
    $region144: #{tpu_custom_call.1} parent=1 // pred_region
      %225 = dma.done [#allocation15], 512
    $region145: #{tpu_custom_call.1} parent=1 // pred_fallthru
      _
    // Predicated region
    $region146: #{tpu_custom_call.1} parent=1 // pred_check
      _
    $region147: #{tpu_custom_call.1} parent=1 // pred_check_branch
      %227 = sbr.rel (0) target = $region149
    $region148: #{tpu_custom_call.1} parent=1 // pred_region
      %229 = dma.done [#allocation15], 512
    $region149: #{tpu_custom_call.1} parent=1 // pred_fallthru
      _
    %v230 = vld [vmem:[#allocation2] sm:$0xff]
    %v231 = vld [vmem:[#allocation2 + $0x8] sm:$0xff]
    %v232 = vld [vmem:[#allocation5] sm:$0xff]
    %v233 = vld [vmem:[#allocation5 + $0x8] sm:$0xff]
    %v234 = vld [vmem:[%s2] sm:$0xff]
    %v235 = vld [vmem:[%s2 + $0x8] sm:$0xff]
    %v236 = vld [vmem:[%s2 + $0x10] sm:$0xff]
    %v237 = vld [vmem:[%s2 + $0x18] sm:$0xff]
    %v238 = vld [vmem:[%s3] sm:$0xff]
    %v239 = vld [vmem:[%s3 + $0x8] sm:$0xff]
    %v240 = vld [vmem:[%s3 + $0x10] sm:$0xff]
    %v241 = vld [vmem:[%s3 + $0x18] sm:$0xff]
    %v242 = vadd.f32 %v230, %v232
    %v243 = vadd.f32 %v231, %v233
    %v244 = vld [vmem:[%s4] sm:$0xff]
    %v245 = vld [vmem:[%s4 + $0x8] sm:$0xff]
    %v246 = vld [vmem:[%s4 + $0x10] sm:$0xff]
    %v247 = vld [vmem:[%s4 + $0x18] sm:$0xff]
    %v248 = vld [vmem:[%s5] sm:$0x1]
    %v250 = vperm.slane %v248, 0
    %vm252 = vcmask 261120
    %v254 = vsel %vm252, %v242, 0
    %v257 = vsel %vm252, %v243, 0
    %259 = vmatpush.msra.mxu0 0.0
    %260 = vmatpush.msra.mxu0 0.0
    %261 = vmatpush.msra.mxu0 0.0
    %262 = vmatpush.msra.mxu0 0.0
    %263 = vmatpush.msra.mxu0 0.0
    %264 = vmatpush.msra.mxu0 0.0
    %265 = vmatpush.msra.mxu0 0.0
    %266 = vmatpush.msra.mxu0 0.0
    %267 = vmatpush.msra.mxu0 0.0
    %268 = vmatpush.msra.mxu0 0.0
    %269 = vmatpush.msra.mxu0 0.0
    %270 = vmatpush.msra.mxu0 0.0
    %271 = vmatpush.msra.mxu0 %v247
    %272 = vmatpush.msra.mxu0 %v246
    %273 = vmatpush.msra.mxu0 %v245
    %274 = vmatpush.msra.mxu0 %v244
    %275 = vmatmul.f32.gmra.mxu0 %v254
    %v276 = vpop.f32.mrf.mxu0
    %v277 = vadd.f32 %v250, %v276
    %278 = vmatmul.f32.gmra.mxu0 %v257
    %v279 = vpop.f32.mrf.mxu0
    %v280 = vadd.f32 %v250, %v279
    %281 = vdwg.mxu0
    %v282 = vld [vmem:[#allocation7] sm:$0xff]
    %v283 = vld [vmem:[#allocation7 + $0x8] sm:$0xff]
    %v284 = vld [vmem:[#allocation7 + $0x10] sm:$0xff]
    %v285 = vld [vmem:[#allocation7 + $0x18] sm:$0xff]
    %v286 = vld [vmem:[%s7] sm:$0x1]
    %v288 = vperm.slane %v286, 0
    %v291 = vsel %vm252, %v230, 0
    %v294 = vsel %vm252, %v231, 0
    %296 = vmatpush.msra.mxu0 0.0
    %297 = vmatpush.msra.mxu0 0.0
    %298 = vmatpush.msra.mxu0 0.0
    %299 = vmatpush.msra.mxu0 0.0
    %300 = vmatpush.msra.mxu0 0.0
    %301 = vmatpush.msra.mxu0 0.0
    %302 = vmatpush.msra.mxu0 0.0
    %303 = vmatpush.msra.mxu0 0.0
    %304 = vmatpush.msra.mxu0 0.0
    %305 = vmatpush.msra.mxu0 0.0
    %306 = vmatpush.msra.mxu0 0.0
    %307 = vmatpush.msra.mxu0 0.0
    %308 = vmatpush.msra.mxu0 %v285
    %309 = vmatpush.msra.mxu0 %v284
    %310 = vmatpush.msra.mxu0 %v283
    %311 = vmatpush.msra.mxu0 %v282
    %312 = vmatmul.f32.gmra.mxu0 %v291
    %v313 = vpop.f32.mrf.mxu0
    %v314 = vadd.f32 %v288, %v313
    %315 = vmatmul.f32.gmra.mxu0 %v294
    %v316 = vpop.f32.mrf.mxu0
    %v317 = vadd.f32 %v288, %v316
    %318 = vdwg.mxu0
    %320 = vrot.lane.b32.xlu0 %v277, 96
    %v321 = vpop.permute.xlu0 %320
    %vm322 = vcmask 64512
    %v323 = vsel %vm322, %v277, 0
    %v325 = vsel %vm322, %v321, 0
    %327 = vmatpush.xpose.msra.mxu0 0.0
    %328 = vmatpush.xpose.msra.mxu0 0.0
    %329 = vmatpush.xpose.msra.mxu0 0.0
    %330 = vmatpush.xpose.msra.mxu0 0.0
    %331 = vmatpush.xpose.msra.mxu0 0.0
    %332 = vmatpush.xpose.msra.mxu0 0.0
    %333 = vmatpush.xpose.msra.mxu0 0.0
    %334 = vmatpush.xpose.msra.mxu0 0.0
    %335 = vmatpush.xpose.msra.mxu0 0.0
    %336 = vmatpush.xpose.msra.mxu0 0.0
    %337 = vmatpush.xpose.msra.mxu0 0.0
    %338 = vmatpush.xpose.msra.mxu0 0.0
    %339 = vmatpush.xpose.msra.mxu0 0.0
    %340 = vmatpush.xpose.msra.mxu0 0.0
    %341 = vmatpush.xpose.msra.mxu0 0.0
    %342 = vmatpush.xpose.msra.mxu0 %v325
    %343 = vmatmul.f32.gmra.mxu0 %v323
    %v344 = vpop.f32.mrf.mxu0
    %v345 = vadd.f32 0.0, %v344
    %346 = vdwg.mxu0
    %348 = vrot.lane.b32.xlu0 %v280, 96
    %v349 = vpop.permute.xlu0 %348
    %v350 = vsel %vm322, %v280, 0
    %v352 = vsel %vm322, %v349, 0
    %354 = vmatpush.xpose.msra.mxu0 0.0
    %355 = vmatpush.xpose.msra.mxu0 0.0
    %356 = vmatpush.xpose.msra.mxu0 0.0
    %357 = vmatpush.xpose.msra.mxu0 0.0
    %358 = vmatpush.xpose.msra.mxu0 0.0
    %359 = vmatpush.xpose.msra.mxu0 0.0
    %360 = vmatpush.xpose.msra.mxu0 0.0
    %361 = vmatpush.xpose.msra.mxu0 0.0
    %362 = vmatpush.xpose.msra.mxu0 0.0
    %363 = vmatpush.xpose.msra.mxu0 0.0
    %364 = vmatpush.xpose.msra.mxu0 0.0
    %365 = vmatpush.xpose.msra.mxu0 0.0
    %366 = vmatpush.xpose.msra.mxu0 0.0
    %367 = vmatpush.xpose.msra.mxu0 0.0
    %368 = vmatpush.xpose.msra.mxu0 0.0
    %369 = vmatpush.xpose.msra.mxu0 %v352
    %370 = vmatmul.f32.gmra.mxu0 %v350
    %v371 = vpop.f32.mrf.mxu0
    %v372 = vadd.f32 0.0, %v371
    %373 = vdwg.mxu0
    %v374 = vsel %vm322, %v345, -inf
    %375 = vmax.xlane.f32.xlu0 %v374
    %v376 = vpop.xlane.xlu0 %375
    %v377 = vsel %vm322, %v372, -inf
    %378 = vmax.xlane.f32.xlu0 %v377
    %v379 = vpop.xlane.xlu0 %378
    %v380 = vsub.f32 %v345, %v376
    %v381 = vsub.f32 %v372, %v379
    %v382 = vmul.f32 %v380, 1.442695
    %v383 = vpow.pop %v382
    %v384 = vmul.f32 %v381, 1.442695
    %v385 = vpow.pop %v384
    %v386 = vsel %vm322, %v383, 0.0
    %387 = vadd.xlane.f32.xlu0 %v386
    %v388 = vpop.xlane.xlu0 %387
    %v389 = vsel %vm322, %v385, 0.0
    %390 = vadd.xlane.f32.xlu0 %v389
    %v391 = vpop.xlane.xlu0 %390
    %v392 = vrcp.pop %v388
    %v393 = vrcp.pop %v391
    %v394 = vmul.f32 %v383, %v392
    %v395 = vmul.f32 %v385, %v393
    %v397 = vsel %vm322, %v394, 0
    %399 = vmatpush.msra.mxu0 0.0
    %400 = vmatpush.msra.mxu0 0.0
    %401 = vmatpush.msra.mxu0 0.0
    %402 = vmatpush.msra.mxu0 0.0
    %403 = vmatpush.msra.mxu0 0.0
    %404 = vmatpush.msra.mxu0 0.0
    %405 = vmatpush.msra.mxu0 0.0
    %406 = vmatpush.msra.mxu0 0.0
    %407 = vmatpush.msra.mxu0 0.0
    %408 = vmatpush.msra.mxu0 0.0
    %409 = vmatpush.msra.mxu0 0.0
    %410 = vmatpush.msra.mxu0 0.0
    %411 = vmatpush.msra.mxu0 0.0
    %412 = vmatpush.msra.mxu0 0.0
    %413 = vmatpush.msra.mxu0 0.0
    %414 = vmatpush.msra.mxu0 %v314
    %415 = vmatmul.f32.gmra.mxu0 %v397
    %v416 = vpop.f32.mrf.mxu0
    %v417 = vadd.f32 0.0, %v416
    %418 = vdwg.mxu0
    %v420 = vsel %vm322, %v395, 0
    %422 = vmatpush.msra.mxu0 0.0
    %423 = vmatpush.msra.mxu0 0.0
    %424 = vmatpush.msra.mxu0 0.0
    %425 = vmatpush.msra.mxu0 0.0
    %426 = vmatpush.msra.mxu0 0.0
    %427 = vmatpush.msra.mxu0 0.0
    %428 = vmatpush.msra.mxu0 0.0
    %429 = vmatpush.msra.mxu0 0.0
    %430 = vmatpush.msra.mxu0 0.0
    %431 = vmatpush.msra.mxu0 0.0
    %432 = vmatpush.msra.mxu0 0.0
    %433 = vmatpush.msra.mxu0 0.0
    %434 = vmatpush.msra.mxu0 0.0
    %435 = vmatpush.msra.mxu0 0.0
    %436 = vmatpush.msra.mxu0 0.0
    %437 = vmatpush.msra.mxu0 %v317
    %438 = vmatmul.f32.gmra.mxu0 %v420
    %v439 = vpop.f32.mrf.mxu0
    %v440 = vadd.f32 0.0, %v439
    %441 = vdwg.mxu0
    %v442 = vld [vmem:[#allocation8] sm:$0xff]
    %443 = vrot.lane.b32.xlu0 %v277, 120
    %v444 = vpop.permute.xlu0 %443
    %445 = vrot.lane.b32.xlu0 %v277, 88
    %v446 = vpop.permute.xlu0 %445
    %v447 = vsel %vm322, %v444, 0
    %v449 = vsel %vm322, %v446, 0
    %451 = vmatpush.xpose.msra.mxu0 0.0
    %452 = vmatpush.xpose.msra.mxu0 0.0
    %453 = vmatpush.xpose.msra.mxu0 0.0
    %454 = vmatpush.xpose.msra.mxu0 0.0
    %455 = vmatpush.xpose.msra.mxu0 0.0
    %456 = vmatpush.xpose.msra.mxu0 0.0
    %457 = vmatpush.xpose.msra.mxu0 0.0
    %458 = vmatpush.xpose.msra.mxu0 0.0
    %459 = vmatpush.xpose.msra.mxu0 0.0
    %460 = vmatpush.xpose.msra.mxu0 0.0
    %461 = vmatpush.xpose.msra.mxu0 0.0
    %462 = vmatpush.xpose.msra.mxu0 0.0
    %463 = vmatpush.xpose.msra.mxu0 0.0
    %464 = vmatpush.xpose.msra.mxu0 0.0
    %465 = vmatpush.xpose.msra.mxu0 0.0
    %466 = vmatpush.xpose.msra.mxu0 %v449
    %467 = vmatmul.f32.gmra.mxu0 %v447
    %v468 = vpop.f32.mrf.mxu0
    %v469 = vadd.f32 0.0, %v468
    %470 = vdwg.mxu0
    %471 = vrot.lane.b32.xlu0 %v280, 120
    %v472 = vpop.permute.xlu0 %471
    %473 = vrot.lane.b32.xlu0 %v280, 88
    %v474 = vpop.permute.xlu0 %473
    %v475 = vsel %vm322, %v472, 0
    %v477 = vsel %vm322, %v474, 0
    %479 = vmatpush.xpose.msra.mxu0 0.0
    %480 = vmatpush.xpose.msra.mxu0 0.0
    %481 = vmatpush.xpose.msra.mxu0 0.0
    %482 = vmatpush.xpose.msra.mxu0 0.0
    %483 = vmatpush.xpose.msra.mxu0 0.0
    %484 = vmatpush.xpose.msra.mxu0 0.0
    %485 = vmatpush.xpose.msra.mxu0 0.0
    %486 = vmatpush.xpose.msra.mxu0 0.0
    %487 = vmatpush.xpose.msra.mxu0 0.0
    %488 = vmatpush.xpose.msra.mxu0 0.0
    %489 = vmatpush.xpose.msra.mxu0 0.0
    %490 = vmatpush.xpose.msra.mxu0 0.0
    %491 = vmatpush.xpose.msra.mxu0 0.0
    %492 = vmatpush.xpose.msra.mxu0 0.0
    %493 = vmatpush.xpose.msra.mxu0 0.0
    %494 = vmatpush.xpose.msra.mxu0 %v477
    %495 = vmatmul.f32.gmra.mxu0 %v475
    %v496 = vpop.f32.mrf.mxu0
    %v497 = vadd.f32 0.0, %v496
    %498 = vdwg.mxu0
    %v499 = vsel %vm322, %v469, -inf
    %500 = vmax.xlane.f32.xlu0 %v499
    %v501 = vpop.xlane.xlu0 %500
    %v502 = vsel %vm322, %v497, -inf
    %503 = vmax.xlane.f32.xlu0 %v502
    %v504 = vpop.xlane.xlu0 %503
    %v505 = vsub.f32 %v469, %v501
    %v506 = vsub.f32 %v497, %v504
    %v507 = vmul.f32 %v505, 1.442695
    %v508 = vpow.pop %v507
    %v509 = vmul.f32 %v506, 1.442695
    %v510 = vpow.pop %v509
    %v511 = vsel %vm322, %v508, 0.0
    %512 = vadd.xlane.f32.xlu0 %v511
    %v513 = vpop.xlane.xlu0 %512
    %v514 = vsel %vm322, %v510, 0.0
    %515 = vadd.xlane.f32.xlu0 %v514
    %v516 = vpop.xlane.xlu0 %515
    %v517 = vrcp.pop %v513
    %v518 = vrcp.pop %v516
    %v519 = vmul.f32 %v508, %v517
    %v520 = vmul.f32 %v510, %v518
    %522 = vrot.lane.b32.xlu0 %v314, 120
    %v523 = vpop.permute.xlu0 %522
    %v526 = vsel %vm322, %v519, 0
    %528 = vmatpush.msra.mxu0 0.0
    %529 = vmatpush.msra.mxu0 0.0
    %530 = vmatpush.msra.mxu0 0.0
    %531 = vmatpush.msra.mxu0 0.0
    %532 = vmatpush.msra.mxu0 0.0
    %533 = vmatpush.msra.mxu0 0.0
    %534 = vmatpush.msra.mxu0 0.0
    %535 = vmatpush.msra.mxu0 0.0
    %536 = vmatpush.msra.mxu0 0.0
    %537 = vmatpush.msra.mxu0 0.0
    %538 = vmatpush.msra.mxu0 0.0
    %539 = vmatpush.msra.mxu0 0.0
    %540 = vmatpush.msra.mxu0 0.0
    %541 = vmatpush.msra.mxu0 0.0
    %542 = vmatpush.msra.mxu0 0.0
    %543 = vmatpush.msra.mxu0 %v523
    %544 = vmatmul.f32.gmra.mxu0 %v526
    %v545 = vpop.f32.mrf.mxu0
    %v546 = vadd.f32 0.0, %v545
    %547 = vdwg.mxu0
    %549 = vrot.lane.b32.xlu0 %v317, 120
    %v550 = vpop.permute.xlu0 %549
    %v553 = vsel %vm322, %v520, 0
    %555 = vmatpush.msra.mxu0 0.0
    %556 = vmatpush.msra.mxu0 0.0
    %557 = vmatpush.msra.mxu0 0.0
    %558 = vmatpush.msra.mxu0 0.0
    %559 = vmatpush.msra.mxu0 0.0
    %560 = vmatpush.msra.mxu0 0.0
    %561 = vmatpush.msra.mxu0 0.0
    %562 = vmatpush.msra.mxu0 0.0
    %563 = vmatpush.msra.mxu0 0.0
    %564 = vmatpush.msra.mxu0 0.0
    %565 = vmatpush.msra.mxu0 0.0
    %566 = vmatpush.msra.mxu0 0.0
    %567 = vmatpush.msra.mxu0 0.0
    %568 = vmatpush.msra.mxu0 0.0
    %569 = vmatpush.msra.mxu0 0.0
    %570 = vmatpush.msra.mxu0 %v550
    %571 = vmatmul.f32.gmra.mxu0 %v553
    %v572 = vpop.f32.mrf.mxu0
    %v573 = vadd.f32 0.0, %v572
    %574 = vdwg.mxu0
    %v575 = vld [vmem:[#allocation8 + $0x8] sm:$0xff]
    %v577 = vsel %vm322, %v546, 0
    %v580 = vsel %vm322, %v573, 0
    %582 = vmatpush.msra.mxu0 0.0
    %583 = vmatpush.msra.mxu0 0.0
    %584 = vmatpush.msra.mxu0 0.0
    %585 = vmatpush.msra.mxu0 0.0
    %586 = vmatpush.msra.mxu0 0.0
    %587 = vmatpush.msra.mxu0 0.0
    %588 = vmatpush.msra.mxu0 0.0
    %589 = vmatpush.msra.mxu0 0.0
    %590 = vmatpush.msra.mxu0 0.0
    %591 = vmatpush.msra.mxu0 0.0
    %592 = vmatpush.msra.mxu0 0.0
    %593 = vmatpush.msra.mxu0 0.0
    %594 = vmatpush.msra.mxu0 0.0
    %595 = vmatpush.msra.mxu0 0.0
    %596 = vmatpush.msra.mxu0 0.0
    %597 = vmatpush.msra.mxu0 %v575
    %598 = vmatmul.f32.gmra.mxu0 %v577
    %v599 = vpop.f32.mrf.mxu0
    %v600 = vadd.f32 0.0, %v599
    %601 = vmatmul.f32.gmra.mxu0 %v580
    %v602 = vpop.f32.mrf.mxu0
    %v603 = vadd.f32 0.0, %v602
    %604 = vdwg.mxu0
    %v606 = vsel %vm322, %v417, 0
    %v609 = vsel %vm322, %v440, 0
    %611 = vmatpush.msra.mxu0 0.0
    %612 = vmatpush.msra.mxu0 0.0
    %613 = vmatpush.msra.mxu0 0.0
    %614 = vmatpush.msra.mxu0 0.0
    %615 = vmatpush.msra.mxu0 0.0
    %616 = vmatpush.msra.mxu0 0.0
    %617 = vmatpush.msra.mxu0 0.0
    %618 = vmatpush.msra.mxu0 0.0
    %619 = vmatpush.msra.mxu0 0.0
    %620 = vmatpush.msra.mxu0 0.0
    %621 = vmatpush.msra.mxu0 0.0
    %622 = vmatpush.msra.mxu0 0.0
    %623 = vmatpush.msra.mxu0 0.0
    %624 = vmatpush.msra.mxu0 0.0
    %625 = vmatpush.msra.mxu0 0.0
    %626 = vmatpush.msra.mxu0 %v442
    %627 = vmatmul.f32.gmra.mxu0 %v606
    %v628 = vpop.f32.mrf.mxu0
    %v629 = vadd.f32 %v600, %v628
    %630 = vmatmul.f32.gmra.mxu0 %v609
    %v631 = vpop.f32.mrf.mxu0
    %v632 = vadd.f32 %v603, %v631
    %633 = vdwg.mxu0
    %634 = vrot.lane.b32.xlu0 %v277, 112
    %v635 = vpop.permute.xlu0 %634
    %636 = vrot.lane.b32.xlu0 %v277, 80
    %v637 = vpop.permute.xlu0 %636
    %v638 = vsel %vm322, %v635, 0
    %v640 = vsel %vm322, %v637, 0
    %642 = vmatpush.xpose.msra.mxu0 0.0
    %643 = vmatpush.xpose.msra.mxu0 0.0
    %644 = vmatpush.xpose.msra.mxu0 0.0
    %645 = vmatpush.xpose.msra.mxu0 0.0
    %646 = vmatpush.xpose.msra.mxu0 0.0
    %647 = vmatpush.xpose.msra.mxu0 0.0
    %648 = vmatpush.xpose.msra.mxu0 0.0
    %649 = vmatpush.xpose.msra.mxu0 0.0
    %650 = vmatpush.xpose.msra.mxu0 0.0
    %651 = vmatpush.xpose.msra.mxu0 0.0
    %652 = vmatpush.xpose.msra.mxu0 0.0
    %653 = vmatpush.xpose.msra.mxu0 0.0
    %654 = vmatpush.xpose.msra.mxu0 0.0
    %655 = vmatpush.xpose.msra.mxu0 0.0
    %656 = vmatpush.xpose.msra.mxu0 0.0
    %657 = vmatpush.xpose.msra.mxu0 %v640
    %658 = vmatmul.f32.gmra.mxu0 %v638
    %v659 = vpop.f32.mrf.mxu0
    %v660 = vadd.f32 0.0, %v659
    %661 = vdwg.mxu0
    %662 = vrot.lane.b32.xlu0 %v280, 112
    %v663 = vpop.permute.xlu0 %662
    %664 = vrot.lane.b32.xlu0 %v280, 80
    %v665 = vpop.permute.xlu0 %664
    %v666 = vsel %vm322, %v663, 0
    %v668 = vsel %vm322, %v665, 0
    %670 = vmatpush.xpose.msra.mxu0 0.0
    %671 = vmatpush.xpose.msra.mxu0 0.0
    %672 = vmatpush.xpose.msra.mxu0 0.0
    %673 = vmatpush.xpose.msra.mxu0 0.0
    %674 = vmatpush.xpose.msra.mxu0 0.0
    %675 = vmatpush.xpose.msra.mxu0 0.0
    %676 = vmatpush.xpose.msra.mxu0 0.0
    %677 = vmatpush.xpose.msra.mxu0 0.0
    %678 = vmatpush.xpose.msra.mxu0 0.0
    %679 = vmatpush.xpose.msra.mxu0 0.0
    %680 = vmatpush.xpose.msra.mxu0 0.0
    %681 = vmatpush.xpose.msra.mxu0 0.0
    %682 = vmatpush.xpose.msra.mxu0 0.0
    %683 = vmatpush.xpose.msra.mxu0 0.0
    %684 = vmatpush.xpose.msra.mxu0 0.0
    %685 = vmatpush.xpose.msra.mxu0 %v668
    %686 = vmatmul.f32.gmra.mxu0 %v666
    %v687 = vpop.f32.mrf.mxu0
    %v688 = vadd.f32 0.0, %v687
    %689 = vdwg.mxu0
    %v690 = vsel %vm322, %v660, -inf
    %691 = vmax.xlane.f32.xlu0 %v690
    %v692 = vpop.xlane.xlu0 %691
    %v693 = vsel %vm322, %v688, -inf
    %694 = vmax.xlane.f32.xlu0 %v693
    %v695 = vpop.xlane.xlu0 %694
    %v696 = vsub.f32 %v660, %v692
    %v697 = vsub.f32 %v688, %v695
    %v698 = vmul.f32 %v696, 1.442695
    %v699 = vpow.pop %v698
    %v700 = vmul.f32 %v697, 1.442695
    %v701 = vpow.pop %v700
    %v702 = vsel %vm322, %v699, 0.0
    %703 = vadd.xlane.f32.xlu0 %v702
    %v704 = vpop.xlane.xlu0 %703
    %v705 = vsel %vm322, %v701, 0.0
    %706 = vadd.xlane.f32.xlu0 %v705
    %v707 = vpop.xlane.xlu0 %706
    %v708 = vrcp.pop %v704
    %v709 = vrcp.pop %v707
    %v710 = vmul.f32 %v699, %v708
    %v711 = vmul.f32 %v701, %v709
    %712 = vrot.lane.b32.xlu0 %v314, 112
    %v713 = vpop.permute.xlu0 %712
    %v716 = vsel %vm322, %v710, 0
    %718 = vmatpush.msra.mxu0 0.0
    %719 = vmatpush.msra.mxu0 0.0
    %720 = vmatpush.msra.mxu0 0.0
    %721 = vmatpush.msra.mxu0 0.0
    %722 = vmatpush.msra.mxu0 0.0
    %723 = vmatpush.msra.mxu0 0.0
    %724 = vmatpush.msra.mxu0 0.0
    %725 = vmatpush.msra.mxu0 0.0
    %726 = vmatpush.msra.mxu0 0.0
    %727 = vmatpush.msra.mxu0 0.0
    %728 = vmatpush.msra.mxu0 0.0
    %729 = vmatpush.msra.mxu0 0.0
    %730 = vmatpush.msra.mxu0 0.0
    %731 = vmatpush.msra.mxu0 0.0
    %732 = vmatpush.msra.mxu0 0.0
    %733 = vmatpush.msra.mxu0 %v713
    %734 = vmatmul.f32.gmra.mxu0 %v716
    %v735 = vpop.f32.mrf.mxu0
    %v736 = vadd.f32 0.0, %v735
    %737 = vdwg.mxu0
    %738 = vrot.lane.b32.xlu0 %v317, 112
    %v739 = vpop.permute.xlu0 %738
    %v742 = vsel %vm322, %v711, 0
    %744 = vmatpush.msra.mxu0 0.0
    %745 = vmatpush.msra.mxu0 0.0
    %746 = vmatpush.msra.mxu0 0.0
    %747 = vmatpush.msra.mxu0 0.0
    %748 = vmatpush.msra.mxu0 0.0
    %749 = vmatpush.msra.mxu0 0.0
    %750 = vmatpush.msra.mxu0 0.0
    %751 = vmatpush.msra.mxu0 0.0
    %752 = vmatpush.msra.mxu0 0.0
    %753 = vmatpush.msra.mxu0 0.0
    %754 = vmatpush.msra.mxu0 0.0
    %755 = vmatpush.msra.mxu0 0.0
    %756 = vmatpush.msra.mxu0 0.0
    %757 = vmatpush.msra.mxu0 0.0
    %758 = vmatpush.msra.mxu0 0.0
    %759 = vmatpush.msra.mxu0 %v739
    %760 = vmatmul.f32.gmra.mxu0 %v742
    %v761 = vpop.f32.mrf.mxu0
    %v762 = vadd.f32 0.0, %v761
    %763 = vdwg.mxu0
    %v764 = vld [vmem:[#allocation8 + $0x10] sm:$0xff]
    %v766 = vsel %vm322, %v736, 0
    %v769 = vsel %vm322, %v762, 0
    %771 = vmatpush.msra.mxu0 0.0
    %772 = vmatpush.msra.mxu0 0.0
    %773 = vmatpush.msra.mxu0 0.0
    %774 = vmatpush.msra.mxu0 0.0
    %775 = vmatpush.msra.mxu0 0.0
    %776 = vmatpush.msra.mxu0 0.0
    %777 = vmatpush.msra.mxu0 0.0
    %778 = vmatpush.msra.mxu0 0.0
    %779 = vmatpush.msra.mxu0 0.0
    %780 = vmatpush.msra.mxu0 0.0
    %781 = vmatpush.msra.mxu0 0.0
    %782 = vmatpush.msra.mxu0 0.0
    %783 = vmatpush.msra.mxu0 0.0
    %784 = vmatpush.msra.mxu0 0.0
    %785 = vmatpush.msra.mxu0 0.0
    %786 = vmatpush.msra.mxu0 %v764
    %787 = vmatmul.f32.gmra.mxu0 %v766
    %v788 = vpop.f32.mrf.mxu0
    %v789 = vadd.f32 0.0, %v788
    %790 = vmatmul.f32.gmra.mxu0 %v769
    %v791 = vpop.f32.mrf.mxu0
    %v792 = vadd.f32 0.0, %v791
    %793 = vdwg.mxu0
    %v794 = vadd.f32 %v629, %v789
    %v795 = vadd.f32 %v632, %v792
    %796 = vrot.lane.b32.xlu0 %v277, 104
    %v797 = vpop.permute.xlu0 %796
    %798 = vrot.lane.b32.xlu0 %v277, 72
    %v799 = vpop.permute.xlu0 %798
    %v800 = vsel %vm322, %v797, 0
    %v802 = vsel %vm322, %v799, 0
    %804 = vmatpush.xpose.msra.mxu0 0.0
    %805 = vmatpush.xpose.msra.mxu0 0.0
    %806 = vmatpush.xpose.msra.mxu0 0.0
    %807 = vmatpush.xpose.msra.mxu0 0.0
    %808 = vmatpush.xpose.msra.mxu0 0.0
    %809 = vmatpush.xpose.msra.mxu0 0.0
    %810 = vmatpush.xpose.msra.mxu0 0.0
    %811 = vmatpush.xpose.msra.mxu0 0.0
    %812 = vmatpush.xpose.msra.mxu0 0.0
    %813 = vmatpush.xpose.msra.mxu0 0.0
    %814 = vmatpush.xpose.msra.mxu0 0.0
    %815 = vmatpush.xpose.msra.mxu0 0.0
    %816 = vmatpush.xpose.msra.mxu0 0.0
    %817 = vmatpush.xpose.msra.mxu0 0.0
    %818 = vmatpush.xpose.msra.mxu0 0.0
    %819 = vmatpush.xpose.msra.mxu0 %v802
    %820 = vmatmul.f32.gmra.mxu0 %v800
    %v821 = vpop.f32.mrf.mxu0
    %v822 = vadd.f32 0.0, %v821
    %823 = vdwg.mxu0
    %824 = vrot.lane.b32.xlu0 %v280, 104
    %v825 = vpop.permute.xlu0 %824
    %826 = vrot.lane.b32.xlu0 %v280, 72
    %v827 = vpop.permute.xlu0 %826
    %v828 = vsel %vm322, %v825, 0
    %v830 = vsel %vm322, %v827, 0
    %832 = vmatpush.xpose.msra.mxu0 0.0
    %833 = vmatpush.xpose.msra.mxu0 0.0
    %834 = vmatpush.xpose.msra.mxu0 0.0
    %835 = vmatpush.xpose.msra.mxu0 0.0
    %836 = vmatpush.xpose.msra.mxu0 0.0
    %837 = vmatpush.xpose.msra.mxu0 0.0
    %838 = vmatpush.xpose.msra.mxu0 0.0
    %839 = vmatpush.xpose.msra.mxu0 0.0
    %840 = vmatpush.xpose.msra.mxu0 0.0
    %841 = vmatpush.xpose.msra.mxu0 0.0
    %842 = vmatpush.xpose.msra.mxu0 0.0
    %843 = vmatpush.xpose.msra.mxu0 0.0
    %844 = vmatpush.xpose.msra.mxu0 0.0
    %845 = vmatpush.xpose.msra.mxu0 0.0
    %846 = vmatpush.xpose.msra.mxu0 0.0
    %847 = vmatpush.xpose.msra.mxu0 %v830
    %848 = vmatmul.f32.gmra.mxu0 %v828
    %v849 = vpop.f32.mrf.mxu0
    %v850 = vadd.f32 0.0, %v849
    %851 = vdwg.mxu0
    %v852 = vsel %vm322, %v822, -inf
    %853 = vmax.xlane.f32.xlu0 %v852
    %v854 = vpop.xlane.xlu0 %853
    %v855 = vsel %vm322, %v850, -inf
    %856 = vmax.xlane.f32.xlu0 %v855
    %v857 = vpop.xlane.xlu0 %856
    %v858 = vsub.f32 %v822, %v854
    %v859 = vsub.f32 %v850, %v857
    %v860 = vmul.f32 %v858, 1.442695
    %v861 = vpow.pop %v860
    %v862 = vmul.f32 %v859, 1.442695
    %v863 = vpow.pop %v862
    %v864 = vsel %vm322, %v861, 0.0
    %865 = vadd.xlane.f32.xlu0 %v864
    %v866 = vpop.xlane.xlu0 %865
    %v867 = vsel %vm322, %v863, 0.0
    %868 = vadd.xlane.f32.xlu0 %v867
    %v869 = vpop.xlane.xlu0 %868
    %v870 = vrcp.pop %v866
    %v871 = vrcp.pop %v869
    %v872 = vmul.f32 %v861, %v870
    %v873 = vmul.f32 %v863, %v871
    %874 = vrot.lane.b32.xlu0 %v314, 104
    %v875 = vpop.permute.xlu0 %874
    %v878 = vsel %vm322, %v872, 0
    %880 = vmatpush.msra.mxu0 0.0
    %881 = vmatpush.msra.mxu0 0.0
    %882 = vmatpush.msra.mxu0 0.0
    %883 = vmatpush.msra.mxu0 0.0
    %884 = vmatpush.msra.mxu0 0.0
    %885 = vmatpush.msra.mxu0 0.0
    %886 = vmatpush.msra.mxu0 0.0
    %887 = vmatpush.msra.mxu0 0.0
    %888 = vmatpush.msra.mxu0 0.0
    %889 = vmatpush.msra.mxu0 0.0
    %890 = vmatpush.msra.mxu0 0.0
    %891 = vmatpush.msra.mxu0 0.0
    %892 = vmatpush.msra.mxu0 0.0
    %893 = vmatpush.msra.mxu0 0.0
    %894 = vmatpush.msra.mxu0 0.0
    %895 = vmatpush.msra.mxu0 %v875
    %896 = vmatmul.f32.gmra.mxu0 %v878
    %v897 = vpop.f32.mrf.mxu0
    %v898 = vadd.f32 0.0, %v897
    %899 = vdwg.mxu0
    %900 = vrot.lane.b32.xlu0 %v317, 104
    %v901 = vpop.permute.xlu0 %900
    %v904 = vsel %vm322, %v873, 0
    %906 = vmatpush.msra.mxu0 0.0
    %907 = vmatpush.msra.mxu0 0.0
    %908 = vmatpush.msra.mxu0 0.0
    %909 = vmatpush.msra.mxu0 0.0
    %910 = vmatpush.msra.mxu0 0.0
    %911 = vmatpush.msra.mxu0 0.0
    %912 = vmatpush.msra.mxu0 0.0
    %913 = vmatpush.msra.mxu0 0.0
    %914 = vmatpush.msra.mxu0 0.0
    %915 = vmatpush.msra.mxu0 0.0
    %916 = vmatpush.msra.mxu0 0.0
    %917 = vmatpush.msra.mxu0 0.0
    %918 = vmatpush.msra.mxu0 0.0
    %919 = vmatpush.msra.mxu0 0.0
    %920 = vmatpush.msra.mxu0 0.0
    %921 = vmatpush.msra.mxu0 %v901
    %922 = vmatmul.f32.gmra.mxu0 %v904
    %v923 = vpop.f32.mrf.mxu0
    %v924 = vadd.f32 0.0, %v923
    %925 = vdwg.mxu0
    %v926 = vld [vmem:[#allocation8 + $0x18] sm:$0xff]
    %v928 = vsel %vm322, %v898, 0
    %v931 = vsel %vm322, %v924, 0
    %933 = vmatpush.msra.mxu0 0.0
    %934 = vmatpush.msra.mxu0 0.0
    %935 = vmatpush.msra.mxu0 0.0
    %936 = vmatpush.msra.mxu0 0.0
    %937 = vmatpush.msra.mxu0 0.0
    %938 = vmatpush.msra.mxu0 0.0
    %939 = vmatpush.msra.mxu0 0.0
    %940 = vmatpush.msra.mxu0 0.0
    %941 = vmatpush.msra.mxu0 0.0
    %942 = vmatpush.msra.mxu0 0.0
    %943 = vmatpush.msra.mxu0 0.0
    %944 = vmatpush.msra.mxu0 0.0
    %945 = vmatpush.msra.mxu0 0.0
    %946 = vmatpush.msra.mxu0 0.0
    %947 = vmatpush.msra.mxu0 0.0
    %948 = vmatpush.msra.mxu0 %v926
    %949 = vmatmul.f32.gmra.mxu0 %v928
    %v950 = vpop.f32.mrf.mxu0
    %v951 = vadd.f32 0.0, %v950
    %952 = vmatmul.f32.gmra.mxu0 %v931
    %v953 = vpop.f32.mrf.mxu0
    %v954 = vadd.f32 0.0, %v953
    %955 = vdwg.mxu0
    %v956 = vadd.f32 %v794, %v951
    %v957 = vadd.f32 %v795, %v954
    %v958 = vld [vmem:[%s9] sm:$0x1]
    %v960 = vperm.slane %v958, 0
    %v962 = vadd.f32 %v956, %v960
    %v963 = vadd.f32 %v957, %v960
    %v964 = vadd.f32 %v230, %v962
    %v965 = vadd.f32 %v231, %v963
    %v966 = vsel %vm252, %v964, 0.0
    %967 = vadd.xlane.f32.xlu0 %v966
    %v968 = vpop.xlane.xlu0 %967
    %v969 = vsel %vm252, %v965, 0.0
    %970 = vadd.xlane.f32.xlu0 %v969
    %v971 = vpop.xlane.xlu0 %970
    %v972 = vrcp.pop 32.0
    %v973 = vmul.f32 32.0, %v972
    %v974 = vsub.f32 1.0, %v973
    %v975 = vmul.f32 %v972, %v974
    %v976 = vadd.f32 %v972, %v975
    %vm977 = vweird.f32 %v972
    %v978 = vsel %vm977, %v972, %v976
    %v979 = vmul.f32 %v968, %v978
    %v980 = vmul.f32 %v971, %v978
    %v981 = vsub.f32 %v964, %v979
    %v982 = vsub.f32 %v965, %v980
    %v983 = vmul.f32 %v981, %v981
    %v984 = vmul.f32 %v982, %v982
    %v985 = vsel %vm252, %v983, 0.0
    %986 = vadd.xlane.f32.xlu0 %v985
    %v987 = vpop.xlane.xlu0 %986
    %v988 = vsel %vm252, %v984, 0.0
    %989 = vadd.xlane.f32.xlu0 %v988
    %v990 = vpop.xlane.xlu0 %989
    %v991 = vmul.f32 %v987, %v978
    %v992 = vmul.f32 %v990, %v978
    %v993 = vadd.f32 %v991, 1e-05
    %v994 = vadd.f32 %v992, 1e-05
    %v995 = vrsqrt.pop %v993
    %v996 = vmul.f32 %v995, %v993
    %v997 = vmul.f32 %v996, %v995
    %v998 = vmul.f32 0.5, %v997
    %v999 = vsub.f32 1.5, %v998
    %v1000 = vmul.f32 %v995, %v999
    %vm1001 = vweird.f32 %v993
    %vm1002 = vweird.f32 %v995
    %vm1003 = vmor %vm1001, %vm1002
    %v1004 = vsel %vm1003, %v995, %v1000
    %v1005 = vrsqrt.pop %v994
    %v1006 = vmul.f32 %v1005, %v994
    %v1007 = vmul.f32 %v1006, %v1005
    %v1008 = vmul.f32 0.5, %v1007
    %v1009 = vsub.f32 1.5, %v1008
    %v1010 = vmul.f32 %v1005, %v1009
    %vm1011 = vweird.f32 %v994
    %vm1012 = vweird.f32 %v1005
    %vm1013 = vmor %vm1011, %vm1012
    %v1014 = vsel %vm1013, %v1005, %v1010
    %v1015 = vmul.f32 %v981, %v1004
    %v1016 = vmul.f32 %v982, %v1014
    %v1017 = vld [vmem:[%s10] sm:$0x1]
    %v1019 = vperm.slane %v1017, 0
    %v1021 = vmul.f32 %v1015, %v1019
    %v1022 = vmul.f32 %v1016, %v1019
    %v1023 = vld [vmem:[%s11] sm:$0x1]
    %v1025 = vperm.slane %v1023, 0
    %v1027 = vadd.f32 %v1021, %v1025
    %v1028 = vadd.f32 %v1022, %v1025
    %v1029 = vadd.f32 %v1027, %v232
    %v1030 = vadd.f32 %v1028, %v233
    %v1031 = vld [vmem:[#allocation10] sm:$0xff]
    %v1032 = vld [vmem:[#allocation10 + $0x8] sm:$0xff]
    %v1033 = vld [vmem:[#allocation10 + $0x10] sm:$0xff]
    %v1034 = vld [vmem:[#allocation10 + $0x18] sm:$0xff]
    %v1035 = vld [vmem:[%s13] sm:$0x1]
    %v1037 = vperm.slane %v1035, 0
    %v1040 = vsel %vm252, %v1029, 0
    %v1043 = vsel %vm252, %v1030, 0
    %1045 = vmatpush.msra.mxu0 0.0
    %1046 = vmatpush.msra.mxu0 0.0
    %1047 = vmatpush.msra.mxu0 0.0
    %1048 = vmatpush.msra.mxu0 0.0
    %1049 = vmatpush.msra.mxu0 0.0
    %1050 = vmatpush.msra.mxu0 0.0
    %1051 = vmatpush.msra.mxu0 0.0
    %1052 = vmatpush.msra.mxu0 0.0
    %1053 = vmatpush.msra.mxu0 0.0
    %1054 = vmatpush.msra.mxu0 0.0
    %1055 = vmatpush.msra.mxu0 0.0
    %1056 = vmatpush.msra.mxu0 0.0
    %1057 = vmatpush.msra.mxu0 %v1034
    %1058 = vmatpush.msra.mxu0 %v1033
    %1059 = vmatpush.msra.mxu0 %v1032
    %1060 = vmatpush.msra.mxu0 %v1031
    %1061 = vmatmul.f32.gmra.mxu0 %v1040
    %v1062 = vpop.f32.mrf.mxu0
    %v1063 = vadd.f32 %v1037, %v1062
    %1064 = vmatmul.f32.gmra.mxu0 %v1043
    %v1065 = vpop.f32.mrf.mxu0
    %v1066 = vadd.f32 %v1037, %v1065
    %1067 = vdwg.mxu0
    %v1068 = vadd.f32 %v234, %v238
    %v1069 = vadd.f32 %v235, %v239
    %v1070 = vadd.f32 %v236, %v240
    %v1071 = vadd.f32 %v237, %v241
    %v1072 = vld [vmem:[#allocation11] sm:$0xff]
    %v1073 = vld [vmem:[#allocation11 + $0x8] sm:$0xff]
    %v1074 = vld [vmem:[#allocation11 + $0x10] sm:$0xff]
    %v1075 = vld [vmem:[#allocation11 + $0x18] sm:$0xff]
    %v1076 = vld [vmem:[%s15] sm:$0x1]
    %v1078 = vperm.slane %v1076, 0
    %v1081 = vsel %vm252, %v1068, 0
    %v1084 = vsel %vm252, %v1069, 0
    %v1087 = vsel %vm252, %v1070, 0
    %v1090 = vsel %vm252, %v1071, 0
    %1092 = vmatpush.msra.mxu0 0.0
    %1093 = vmatpush.msra.mxu0 0.0
    %1094 = vmatpush.msra.mxu0 0.0
    %1095 = vmatpush.msra.mxu0 0.0
    %1096 = vmatpush.msra.mxu0 0.0
    %1097 = vmatpush.msra.mxu0 0.0
    %1098 = vmatpush.msra.mxu0 0.0
    %1099 = vmatpush.msra.mxu0 0.0
    %1100 = vmatpush.msra.mxu0 0.0
    %1101 = vmatpush.msra.mxu0 0.0
    %1102 = vmatpush.msra.mxu0 0.0
    %1103 = vmatpush.msra.mxu0 0.0
    %1104 = vmatpush.msra.mxu0 %v1075
    %1105 = vmatpush.msra.mxu0 %v1074
    %1106 = vmatpush.msra.mxu0 %v1073
    %1107 = vmatpush.msra.mxu0 %v1072
    %1108 = vmatmul.f32.gmra.mxu0 %v1081
    %v1109 = vpop.f32.mrf.mxu0
    %v1110 = vadd.f32 %v1078, %v1109
    %1111 = vmatmul.f32.gmra.mxu0 %v1084
    %v1112 = vpop.f32.mrf.mxu0
    %v1113 = vadd.f32 %v1078, %v1112
    %1114 = vmatmul.f32.gmra.mxu0 %v1087
    %v1115 = vpop.f32.mrf.mxu0
    %v1116 = vadd.f32 %v1078, %v1115
    %1117 = vmatmul.f32.gmra.mxu0 %v1090
    %v1118 = vpop.f32.mrf.mxu0
    %v1119 = vadd.f32 %v1078, %v1118
    %1120 = vdwg.mxu0
    %v1121 = vld [vmem:[#allocation13] sm:$0xff]
    %v1122 = vld [vmem:[#allocation13 + $0x8] sm:$0xff]
    %v1123 = vld [vmem:[#allocation13 + $0x10] sm:$0xff]
    %v1124 = vld [vmem:[#allocation13 + $0x18] sm:$0xff]
    %v1125 = vld [vmem:[%s17] sm:$0x1]
    %v1127 = vperm.slane %v1125, 0
    %v1130 = vsel %vm252, %v234, 0
    %v1133 = vsel %vm252, %v235, 0
    %v1136 = vsel %vm252, %v236, 0
    %v1139 = vsel %vm252, %v237, 0
    %1141 = vmatpush.msra.mxu0 0.0
    %1142 = vmatpush.msra.mxu0 0.0
    %1143 = vmatpush.msra.mxu0 0.0
    %1144 = vmatpush.msra.mxu0 0.0
    %1145 = vmatpush.msra.mxu0 0.0
    %1146 = vmatpush.msra.mxu0 0.0
    %1147 = vmatpush.msra.mxu0 0.0
    %1148 = vmatpush.msra.mxu0 0.0
    %1149 = vmatpush.msra.mxu0 0.0
    %1150 = vmatpush.msra.mxu0 0.0
    %1151 = vmatpush.msra.mxu0 0.0
    %1152 = vmatpush.msra.mxu0 0.0
    %1153 = vmatpush.msra.mxu0 %v1124
    %1154 = vmatpush.msra.mxu0 %v1123
    %1155 = vmatpush.msra.mxu0 %v1122
    %1156 = vmatpush.msra.mxu0 %v1121
    %1157 = vmatmul.f32.gmra.mxu0 %v1130
    %v1158 = vpop.f32.mrf.mxu0
    %v1159 = vadd.f32 %v1127, %v1158
    %1160 = vmatmul.f32.gmra.mxu0 %v1133
    %v1161 = vpop.f32.mrf.mxu0
    %v1162 = vadd.f32 %v1127, %v1161
    %1163 = vmatmul.f32.gmra.mxu0 %v1136
    %v1164 = vpop.f32.mrf.mxu0
    %v1165 = vadd.f32 %v1127, %v1164
    %1166 = vmatmul.f32.gmra.mxu0 %v1139
    %v1167 = vpop.f32.mrf.mxu0
    %v1168 = vadd.f32 %v1127, %v1167
    %1169 = vdwg.mxu0
    %v1171 = vsel %vm322, %v1063, 0
    %v1174 = vsel %vm322, %v1110, 0
    %v1177 = vsel %vm322, %v1113, 0
    %1179 = vmatpush.xpose.msra.mxu0 0.0
    %1180 = vmatpush.xpose.msra.mxu0 0.0
    %1181 = vmatpush.xpose.msra.mxu0 0.0
    %1182 = vmatpush.xpose.msra.mxu0 0.0
    %1183 = vmatpush.xpose.msra.mxu0 0.0
    %1184 = vmatpush.xpose.msra.mxu0 0.0
    %1185 = vmatpush.xpose.msra.mxu0 0.0
    %1186 = vmatpush.xpose.msra.mxu0 0.0
    %1187 = vmatpush.xpose.msra.mxu0 0.0
    %1188 = vmatpush.xpose.msra.mxu0 0.0
    %1189 = vmatpush.xpose.msra.mxu0 0.0
    %1190 = vmatpush.xpose.msra.mxu0 0.0
    %1191 = vmatpush.xpose.msra.mxu0 0.0
    %1192 = vmatpush.xpose.msra.mxu0 0.0
    %1193 = vmatpush.xpose.msra.mxu0 %v1177
    %1194 = vmatpush.xpose.msra.mxu0 %v1174
    %1195 = vmatmul.f32.gmra.mxu0 %v1171
    %v1196 = vpop.f32.mrf.mxu0
    %v1197 = vadd.f32 0.0, %v1196
    %1198 = vdwg.mxu0
    %v1200 = vsel %vm322, %v1066, 0
    %v1203 = vsel %vm322, %v1116, 0
    %v1206 = vsel %vm322, %v1119, 0
    %1208 = vmatpush.xpose.msra.mxu0 0.0
    %1209 = vmatpush.xpose.msra.mxu0 0.0
    %1210 = vmatpush.xpose.msra.mxu0 0.0
    %1211 = vmatpush.xpose.msra.mxu0 0.0
    %1212 = vmatpush.xpose.msra.mxu0 0.0
    %1213 = vmatpush.xpose.msra.mxu0 0.0
    %1214 = vmatpush.xpose.msra.mxu0 0.0
    %1215 = vmatpush.xpose.msra.mxu0 0.0
    %1216 = vmatpush.xpose.msra.mxu0 0.0
    %1217 = vmatpush.xpose.msra.mxu0 0.0
    %1218 = vmatpush.xpose.msra.mxu0 0.0
    %1219 = vmatpush.xpose.msra.mxu0 0.0
    %1220 = vmatpush.xpose.msra.mxu0 0.0
    %1221 = vmatpush.xpose.msra.mxu0 0.0
    %1222 = vmatpush.xpose.msra.mxu0 %v1206
    %1223 = vmatpush.xpose.msra.mxu0 %v1203
    %1224 = vmatmul.f32.gmra.mxu0 %v1200
    %v1225 = vpop.f32.mrf.mxu0
    %v1226 = vadd.f32 0.0, %v1225
    %1227 = vdwg.mxu0
    %vm1228 = vcmask 130048
    %v1229 = vsel %vm1228, %v1197, -inf
    %1230 = vmax.xlane.f32.xlu0 %v1229
    %v1231 = vpop.xlane.xlu0 %1230
    %v1232 = vsel %vm1228, %v1226, -inf
    %1233 = vmax.xlane.f32.xlu0 %v1232
    %v1234 = vpop.xlane.xlu0 %1233
    %v1235 = vsub.f32 %v1197, %v1231
    %v1236 = vsub.f32 %v1226, %v1234
    %v1237 = vmul.f32 %v1235, 1.442695
    %v1238 = vpow.pop %v1237
    %v1239 = vmul.f32 %v1236, 1.442695
    %v1240 = vpow.pop %v1239
    %v1241 = vsel %vm1228, %v1238, 0.0
    %1242 = vadd.xlane.f32.xlu0 %v1241
    %v1243 = vpop.xlane.xlu0 %1242
    %v1244 = vsel %vm1228, %v1240, 0.0
    %1245 = vadd.xlane.f32.xlu0 %v1244
    %v1246 = vpop.xlane.xlu0 %1245
    %v1247 = vrcp.pop %v1243
    %v1248 = vrcp.pop %v1246
    %v1249 = vmul.f32 %v1238, %v1247
    %v1250 = vmul.f32 %v1240, %v1248
    %v1252 = vsel %vm1228, %v1249, 0
    %1254 = vmatpush.msra.mxu0 0.0
    %1255 = vmatpush.msra.mxu0 0.0
    %1256 = vmatpush.msra.mxu0 0.0
    %1257 = vmatpush.msra.mxu0 0.0
    %1258 = vmatpush.msra.mxu0 0.0
    %1259 = vmatpush.msra.mxu0 0.0
    %1260 = vmatpush.msra.mxu0 0.0
    %1261 = vmatpush.msra.mxu0 0.0
    %1262 = vmatpush.msra.mxu0 0.0
    %1263 = vmatpush.msra.mxu0 0.0
    %1264 = vmatpush.msra.mxu0 0.0
    %1265 = vmatpush.msra.mxu0 0.0
    %1266 = vmatpush.msra.mxu0 0.0
    %1267 = vmatpush.msra.mxu0 0.0
    %1268 = vmatpush.msra.mxu0 %v1162
    %1269 = vmatpush.msra.mxu0 %v1159
    %1270 = vmatmul.f32.gmra.mxu0 %v1252
    %v1271 = vpop.f32.mrf.mxu0
    %v1272 = vadd.f32 0.0, %v1271
    %1273 = vdwg.mxu0
    %v1275 = vsel %vm1228, %v1250, 0
    %1277 = vmatpush.msra.mxu0 0.0
    %1278 = vmatpush.msra.mxu0 0.0
    %1279 = vmatpush.msra.mxu0 0.0
    %1280 = vmatpush.msra.mxu0 0.0
    %1281 = vmatpush.msra.mxu0 0.0
    %1282 = vmatpush.msra.mxu0 0.0
    %1283 = vmatpush.msra.mxu0 0.0
    %1284 = vmatpush.msra.mxu0 0.0
    %1285 = vmatpush.msra.mxu0 0.0
    %1286 = vmatpush.msra.mxu0 0.0
    %1287 = vmatpush.msra.mxu0 0.0
    %1288 = vmatpush.msra.mxu0 0.0
    %1289 = vmatpush.msra.mxu0 0.0
    %1290 = vmatpush.msra.mxu0 0.0
    %1291 = vmatpush.msra.mxu0 %v1168
    %1292 = vmatpush.msra.mxu0 %v1165
    %1293 = vmatmul.f32.gmra.mxu0 %v1275
    %v1294 = vpop.f32.mrf.mxu0
    %v1295 = vadd.f32 0.0, %v1294
    %1296 = vdwg.mxu0
    %v1297 = vld [vmem:[#allocation14] sm:$0xff]
    %1298 = vrot.lane.b32.xlu0 %v1063, 120
    %v1299 = vpop.permute.xlu0 %1298
    %1300 = vrot.lane.b32.xlu0 %v1110, 120
    %v1301 = vpop.permute.xlu0 %1300
    %1302 = vrot.lane.b32.xlu0 %v1113, 120
    %v1303 = vpop.permute.xlu0 %1302
    %v1304 = vsel %vm322, %v1299, 0
    %v1306 = vsel %vm322, %v1301, 0
    %v1308 = vsel %vm322, %v1303, 0
    %1310 = vmatpush.xpose.msra.mxu0 0.0
    %1311 = vmatpush.xpose.msra.mxu0 0.0
    %1312 = vmatpush.xpose.msra.mxu0 0.0
    %1313 = vmatpush.xpose.msra.mxu0 0.0
    %1314 = vmatpush.xpose.msra.mxu0 0.0
    %1315 = vmatpush.xpose.msra.mxu0 0.0
    %1316 = vmatpush.xpose.msra.mxu0 0.0
    %1317 = vmatpush.xpose.msra.mxu0 0.0
    %1318 = vmatpush.xpose.msra.mxu0 0.0
    %1319 = vmatpush.xpose.msra.mxu0 0.0
    %1320 = vmatpush.xpose.msra.mxu0 0.0
    %1321 = vmatpush.xpose.msra.mxu0 0.0
    %1322 = vmatpush.xpose.msra.mxu0 0.0
    %1323 = vmatpush.xpose.msra.mxu0 0.0
    %1324 = vmatpush.xpose.msra.mxu0 %v1308
    %1325 = vmatpush.xpose.msra.mxu0 %v1306
    %1326 = vmatmul.f32.gmra.mxu0 %v1304
    %v1327 = vpop.f32.mrf.mxu0
    %v1328 = vadd.f32 0.0, %v1327
    %1329 = vdwg.mxu0
    %1330 = vrot.lane.b32.xlu0 %v1066, 120
    %v1331 = vpop.permute.xlu0 %1330
    %1332 = vrot.lane.b32.xlu0 %v1116, 120
    %v1333 = vpop.permute.xlu0 %1332
    %1334 = vrot.lane.b32.xlu0 %v1119, 120
    %v1335 = vpop.permute.xlu0 %1334
    %v1336 = vsel %vm322, %v1331, 0
    %v1338 = vsel %vm322, %v1333, 0
    %v1340 = vsel %vm322, %v1335, 0
    %1342 = vmatpush.xpose.msra.mxu0 0.0
    %1343 = vmatpush.xpose.msra.mxu0 0.0
    %1344 = vmatpush.xpose.msra.mxu0 0.0
    %1345 = vmatpush.xpose.msra.mxu0 0.0
    %1346 = vmatpush.xpose.msra.mxu0 0.0
    %1347 = vmatpush.xpose.msra.mxu0 0.0
    %1348 = vmatpush.xpose.msra.mxu0 0.0
    %1349 = vmatpush.xpose.msra.mxu0 0.0
    %1350 = vmatpush.xpose.msra.mxu0 0.0
    %1351 = vmatpush.xpose.msra.mxu0 0.0
    %1352 = vmatpush.xpose.msra.mxu0 0.0
    %1353 = vmatpush.xpose.msra.mxu0 0.0
    %1354 = vmatpush.xpose.msra.mxu0 0.0
    %1355 = vmatpush.xpose.msra.mxu0 0.0
    %1356 = vmatpush.xpose.msra.mxu0 %v1340
    %1357 = vmatpush.xpose.msra.mxu0 %v1338
    %1358 = vmatmul.f32.gmra.mxu0 %v1336
    %v1359 = vpop.f32.mrf.mxu0
    %v1360 = vadd.f32 0.0, %v1359
    %1361 = vdwg.mxu0
    %v1362 = vsel %vm1228, %v1328, -inf
    %1363 = vmax.xlane.f32.xlu0 %v1362
    %v1364 = vpop.xlane.xlu0 %1363
    %v1365 = vsel %vm1228, %v1360, -inf
    %1366 = vmax.xlane.f32.xlu0 %v1365
    %v1367 = vpop.xlane.xlu0 %1366
    %v1368 = vsub.f32 %v1328, %v1364
    %v1369 = vsub.f32 %v1360, %v1367
    %v1370 = vmul.f32 %v1368, 1.442695
    %v1371 = vpow.pop %v1370
    %v1372 = vmul.f32 %v1369, 1.442695
    %v1373 = vpow.pop %v1372
    %v1374 = vsel %vm1228, %v1371, 0.0
    %1375 = vadd.xlane.f32.xlu0 %v1374
    %v1376 = vpop.xlane.xlu0 %1375
    %v1377 = vsel %vm1228, %v1373, 0.0
    %1378 = vadd.xlane.f32.xlu0 %v1377
    %v1379 = vpop.xlane.xlu0 %1378
    %v1380 = vrcp.pop %v1376
    %v1381 = vrcp.pop %v1379
    %v1382 = vmul.f32 %v1371, %v1380
    %v1383 = vmul.f32 %v1373, %v1381
    %1386 = vrot.lane.b32.xlu0 %v1159, 120
    %v1387 = vpop.permute.xlu0 %1386
    %1388 = vrot.lane.b32.xlu0 %v1162, 120
    %v1389 = vpop.permute.xlu0 %1388
    %v1393 = vsel %vm1228, %v1382, 0
    %1395 = vmatpush.msra.mxu0 0.0
    %1396 = vmatpush.msra.mxu0 0.0
    %1397 = vmatpush.msra.mxu0 0.0
    %1398 = vmatpush.msra.mxu0 0.0
    %1399 = vmatpush.msra.mxu0 0.0
    %1400 = vmatpush.msra.mxu0 0.0
    %1401 = vmatpush.msra.mxu0 0.0
    %1402 = vmatpush.msra.mxu0 0.0
    %1403 = vmatpush.msra.mxu0 0.0
    %1404 = vmatpush.msra.mxu0 0.0
    %1405 = vmatpush.msra.mxu0 0.0
    %1406 = vmatpush.msra.mxu0 0.0
    %1407 = vmatpush.msra.mxu0 0.0
    %1408 = vmatpush.msra.mxu0 0.0
    %1409 = vmatpush.msra.mxu0 %v1389
    %1410 = vmatpush.msra.mxu0 %v1387
    %1411 = vmatmul.f32.gmra.mxu0 %v1393
    %v1412 = vpop.f32.mrf.mxu0
    %v1413 = vadd.f32 0.0, %v1412
    %1414 = vdwg.mxu0
    %1417 = vrot.lane.b32.xlu0 %v1165, 120
    %v1418 = vpop.permute.xlu0 %1417
    %1419 = vrot.lane.b32.xlu0 %v1168, 120
    %v1420 = vpop.permute.xlu0 %1419
    %v1424 = vsel %vm1228, %v1383, 0
    %1426 = vmatpush.msra.mxu0 0.0
    %1427 = vmatpush.msra.mxu0 0.0
    %1428 = vmatpush.msra.mxu0 0.0
    %1429 = vmatpush.msra.mxu0 0.0
    %1430 = vmatpush.msra.mxu0 0.0
    %1431 = vmatpush.msra.mxu0 0.0
    %1432 = vmatpush.msra.mxu0 0.0
    %1433 = vmatpush.msra.mxu0 0.0
    %1434 = vmatpush.msra.mxu0 0.0
    %1435 = vmatpush.msra.mxu0 0.0
    %1436 = vmatpush.msra.mxu0 0.0
    %1437 = vmatpush.msra.mxu0 0.0
    %1438 = vmatpush.msra.mxu0 0.0
    %1439 = vmatpush.msra.mxu0 0.0
    %1440 = vmatpush.msra.mxu0 %v1420
    %1441 = vmatpush.msra.mxu0 %v1418
    %1442 = vmatmul.f32.gmra.mxu0 %v1424
    %v1443 = vpop.f32.mrf.mxu0
    %v1444 = vadd.f32 0.0, %v1443
    %1445 = vdwg.mxu0
    %v1446 = vld [vmem:[#allocation14 + $0x8] sm:$0xff]
    %v1448 = vsel %vm322, %v1413, 0
    %v1451 = vsel %vm322, %v1444, 0
    %1453 = vmatpush.msra.mxu0 0.0
    %1454 = vmatpush.msra.mxu0 0.0
    %1455 = vmatpush.msra.mxu0 0.0
    %1456 = vmatpush.msra.mxu0 0.0
    %1457 = vmatpush.msra.mxu0 0.0
    %1458 = vmatpush.msra.mxu0 0.0
    %1459 = vmatpush.msra.mxu0 0.0
    %1460 = vmatpush.msra.mxu0 0.0
    %1461 = vmatpush.msra.mxu0 0.0
    %1462 = vmatpush.msra.mxu0 0.0
    %1463 = vmatpush.msra.mxu0 0.0
    %1464 = vmatpush.msra.mxu0 0.0
    %1465 = vmatpush.msra.mxu0 0.0
    %1466 = vmatpush.msra.mxu0 0.0
    %1467 = vmatpush.msra.mxu0 0.0
    %1468 = vmatpush.msra.mxu0 %v1446
    %1469 = vmatmul.f32.gmra.mxu0 %v1448
    %v1470 = vpop.f32.mrf.mxu0
    %v1471 = vadd.f32 0.0, %v1470
    %1472 = vmatmul.f32.gmra.mxu0 %v1451
    %v1473 = vpop.f32.mrf.mxu0
    %v1474 = vadd.f32 0.0, %v1473
    %1475 = vdwg.mxu0
    %v1477 = vsel %vm322, %v1272, 0
    %v1480 = vsel %vm322, %v1295, 0
    %1482 = vmatpush.msra.mxu0 0.0
    %1483 = vmatpush.msra.mxu0 0.0
    %1484 = vmatpush.msra.mxu0 0.0
    %1485 = vmatpush.msra.mxu0 0.0
    %1486 = vmatpush.msra.mxu0 0.0
    %1487 = vmatpush.msra.mxu0 0.0
    %1488 = vmatpush.msra.mxu0 0.0
    %1489 = vmatpush.msra.mxu0 0.0
    %1490 = vmatpush.msra.mxu0 0.0
    %1491 = vmatpush.msra.mxu0 0.0
    %1492 = vmatpush.msra.mxu0 0.0
    %1493 = vmatpush.msra.mxu0 0.0
    %1494 = vmatpush.msra.mxu0 0.0
    %1495 = vmatpush.msra.mxu0 0.0
    %1496 = vmatpush.msra.mxu0 0.0
    %1497 = vmatpush.msra.mxu0 %v1297
    %1498 = vmatmul.f32.gmra.mxu0 %v1477
    %v1499 = vpop.f32.mrf.mxu0
    %v1500 = vadd.f32 %v1471, %v1499
    %1501 = vmatmul.f32.gmra.mxu0 %v1480
    %v1502 = vpop.f32.mrf.mxu0
    %v1503 = vadd.f32 %v1474, %v1502
    %1504 = vdwg.mxu0
    %1505 = vrot.lane.b32.xlu0 %v1063, 112
    %v1506 = vpop.permute.xlu0 %1505
    %1507 = vrot.lane.b32.xlu0 %v1110, 112
    %v1508 = vpop.permute.xlu0 %1507
    %1509 = vrot.lane.b32.xlu0 %v1113, 112
    %v1510 = vpop.permute.xlu0 %1509
    %v1511 = vsel %vm322, %v1506, 0
    %v1513 = vsel %vm322, %v1508, 0
    %v1515 = vsel %vm322, %v1510, 0
    %1517 = vmatpush.xpose.msra.mxu0 0.0
    %1518 = vmatpush.xpose.msra.mxu0 0.0
    %1519 = vmatpush.xpose.msra.mxu0 0.0
    %1520 = vmatpush.xpose.msra.mxu0 0.0
    %1521 = vmatpush.xpose.msra.mxu0 0.0
    %1522 = vmatpush.xpose.msra.mxu0 0.0
    %1523 = vmatpush.xpose.msra.mxu0 0.0
    %1524 = vmatpush.xpose.msra.mxu0 0.0
    %1525 = vmatpush.xpose.msra.mxu0 0.0
    %1526 = vmatpush.xpose.msra.mxu0 0.0
    %1527 = vmatpush.xpose.msra.mxu0 0.0
    %1528 = vmatpush.xpose.msra.mxu0 0.0
    %1529 = vmatpush.xpose.msra.mxu0 0.0
    %1530 = vmatpush.xpose.msra.mxu0 0.0
    %1531 = vmatpush.xpose.msra.mxu0 %v1515
    %1532 = vmatpush.xpose.msra.mxu0 %v1513
    %1533 = vmatmul.f32.gmra.mxu0 %v1511
    %v1534 = vpop.f32.mrf.mxu0
    %v1535 = vadd.f32 0.0, %v1534
    %1536 = vdwg.mxu0
    %1537 = vrot.lane.b32.xlu0 %v1066, 112
    %v1538 = vpop.permute.xlu0 %1537
    %1539 = vrot.lane.b32.xlu0 %v1116, 112
    %v1540 = vpop.permute.xlu0 %1539
    %1541 = vrot.lane.b32.xlu0 %v1119, 112
    %v1542 = vpop.permute.xlu0 %1541
    %v1543 = vsel %vm322, %v1538, 0
    %v1545 = vsel %vm322, %v1540, 0
    %v1547 = vsel %vm322, %v1542, 0
    %1549 = vmatpush.xpose.msra.mxu0 0.0
    %1550 = vmatpush.xpose.msra.mxu0 0.0
    %1551 = vmatpush.xpose.msra.mxu0 0.0
    %1552 = vmatpush.xpose.msra.mxu0 0.0
    %1553 = vmatpush.xpose.msra.mxu0 0.0
    %1554 = vmatpush.xpose.msra.mxu0 0.0
    %1555 = vmatpush.xpose.msra.mxu0 0.0
    %1556 = vmatpush.xpose.msra.mxu0 0.0
    %1557 = vmatpush.xpose.msra.mxu0 0.0
    %1558 = vmatpush.xpose.msra.mxu0 0.0
    %1559 = vmatpush.xpose.msra.mxu0 0.0
    %1560 = vmatpush.xpose.msra.mxu0 0.0
    %1561 = vmatpush.xpose.msra.mxu0 0.0
    %1562 = vmatpush.xpose.msra.mxu0 0.0
    %1563 = vmatpush.xpose.msra.mxu0 %v1547
    %1564 = vmatpush.xpose.msra.mxu0 %v1545
    %1565 = vmatmul.f32.gmra.mxu0 %v1543
    %v1566 = vpop.f32.mrf.mxu0
    %v1567 = vadd.f32 0.0, %v1566
    %1568 = vdwg.mxu0
    %v1569 = vsel %vm1228, %v1535, -inf
    %1570 = vmax.xlane.f32.xlu0 %v1569
    %v1571 = vpop.xlane.xlu0 %1570
    %v1572 = vsel %vm1228, %v1567, -inf
    %1573 = vmax.xlane.f32.xlu0 %v1572
    %v1574 = vpop.xlane.xlu0 %1573
    %v1575 = vsub.f32 %v1535, %v1571
    %v1576 = vsub.f32 %v1567, %v1574
    %v1577 = vmul.f32 %v1575, 1.442695
    %v1578 = vpow.pop %v1577
    %v1579 = vmul.f32 %v1576, 1.442695
    %v1580 = vpow.pop %v1579
    %v1581 = vsel %vm1228, %v1578, 0.0
    %1582 = vadd.xlane.f32.xlu0 %v1581
    %v1583 = vpop.xlane.xlu0 %1582
    %v1584 = vsel %vm1228, %v1580, 0.0
    %1585 = vadd.xlane.f32.xlu0 %v1584
    %v1586 = vpop.xlane.xlu0 %1585
    %v1587 = vrcp.pop %v1583
    %v1588 = vrcp.pop %v1586
    %v1589 = vmul.f32 %v1578, %v1587
    %v1590 = vmul.f32 %v1580, %v1588
    %1591 = vrot.lane.b32.xlu0 %v1159, 112
    %v1592 = vpop.permute.xlu0 %1591
    %1593 = vrot.lane.b32.xlu0 %v1162, 112
    %v1594 = vpop.permute.xlu0 %1593
    %v1598 = vsel %vm1228, %v1589, 0
    %1600 = vmatpush.msra.mxu0 0.0
    %1601 = vmatpush.msra.mxu0 0.0
    %1602 = vmatpush.msra.mxu0 0.0
    %1603 = vmatpush.msra.mxu0 0.0
    %1604 = vmatpush.msra.mxu0 0.0
    %1605 = vmatpush.msra.mxu0 0.0
    %1606 = vmatpush.msra.mxu0 0.0
    %1607 = vmatpush.msra.mxu0 0.0
    %1608 = vmatpush.msra.mxu0 0.0
    %1609 = vmatpush.msra.mxu0 0.0
    %1610 = vmatpush.msra.mxu0 0.0
    %1611 = vmatpush.msra.mxu0 0.0
    %1612 = vmatpush.msra.mxu0 0.0
    %1613 = vmatpush.msra.mxu0 0.0
    %1614 = vmatpush.msra.mxu0 %v1594
    %1615 = vmatpush.msra.mxu0 %v1592
    %1616 = vmatmul.f32.gmra.mxu0 %v1598
    %v1617 = vpop.f32.mrf.mxu0
    %v1618 = vadd.f32 0.0, %v1617
    %1619 = vdwg.mxu0
    %1620 = vrot.lane.b32.xlu0 %v1165, 112
    %v1621 = vpop.permute.xlu0 %1620
    %1622 = vrot.lane.b32.xlu0 %v1168, 112
    %v1623 = vpop.permute.xlu0 %1622
    %v1627 = vsel %vm1228, %v1590, 0
    %1629 = vmatpush.msra.mxu0 0.0
    %1630 = vmatpush.msra.mxu0 0.0
    %1631 = vmatpush.msra.mxu0 0.0
    %1632 = vmatpush.msra.mxu0 0.0
    %1633 = vmatpush.msra.mxu0 0.0
    %1634 = vmatpush.msra.mxu0 0.0
    %1635 = vmatpush.msra.mxu0 0.0
    %1636 = vmatpush.msra.mxu0 0.0
    %1637 = vmatpush.msra.mxu0 0.0
    %1638 = vmatpush.msra.mxu0 0.0
    %1639 = vmatpush.msra.mxu0 0.0
    %1640 = vmatpush.msra.mxu0 0.0
    %1641 = vmatpush.msra.mxu0 0.0
    %1642 = vmatpush.msra.mxu0 0.0
    %1643 = vmatpush.msra.mxu0 %v1623
    %1644 = vmatpush.msra.mxu0 %v1621
    %1645 = vmatmul.f32.gmra.mxu0 %v1627
    %v1646 = vpop.f32.mrf.mxu0
    %v1647 = vadd.f32 0.0, %v1646
    %1648 = vdwg.mxu0
    %v1649 = vld [vmem:[#allocation14 + $0x10] sm:$0xff]
    %v1651 = vsel %vm322, %v1618, 0
    %v1654 = vsel %vm322, %v1647, 0
    %1656 = vmatpush.msra.mxu0 0.0
    %1657 = vmatpush.msra.mxu0 0.0
    %1658 = vmatpush.msra.mxu0 0.0
    %1659 = vmatpush.msra.mxu0 0.0
    %1660 = vmatpush.msra.mxu0 0.0
    %1661 = vmatpush.msra.mxu0 0.0
    %1662 = vmatpush.msra.mxu0 0.0
    %1663 = vmatpush.msra.mxu0 0.0
    %1664 = vmatpush.msra.mxu0 0.0
    %1665 = vmatpush.msra.mxu0 0.0
    %1666 = vmatpush.msra.mxu0 0.0
    %1667 = vmatpush.msra.mxu0 0.0
    %1668 = vmatpush.msra.mxu0 0.0
    %1669 = vmatpush.msra.mxu0 0.0
    %1670 = vmatpush.msra.mxu0 0.0
    %1671 = vmatpush.msra.mxu0 %v1649
    %1672 = vmatmul.f32.gmra.mxu0 %v1651
    %v1673 = vpop.f32.mrf.mxu0
    %v1674 = vadd.f32 0.0, %v1673
    %1675 = vmatmul.f32.gmra.mxu0 %v1654
    %v1676 = vpop.f32.mrf.mxu0
    %v1677 = vadd.f32 0.0, %v1676
    %1678 = vdwg.mxu0
    %v1679 = vadd.f32 %v1500, %v1674
    %v1680 = vadd.f32 %v1503, %v1677
    %1681 = vrot.lane.b32.xlu0 %v1063, 104
    %v1682 = vpop.permute.xlu0 %1681
    %1683 = vrot.lane.b32.xlu0 %v1110, 104
    %v1684 = vpop.permute.xlu0 %1683
    %1685 = vrot.lane.b32.xlu0 %v1113, 104
    %v1686 = vpop.permute.xlu0 %1685
    %v1687 = vsel %vm322, %v1682, 0
    %v1689 = vsel %vm322, %v1684, 0
    %v1691 = vsel %vm322, %v1686, 0
    %1693 = vmatpush.xpose.msra.mxu0 0.0
    %1694 = vmatpush.xpose.msra.mxu0 0.0
    %1695 = vmatpush.xpose.msra.mxu0 0.0
    %1696 = vmatpush.xpose.msra.mxu0 0.0
    %1697 = vmatpush.xpose.msra.mxu0 0.0
    %1698 = vmatpush.xpose.msra.mxu0 0.0
    %1699 = vmatpush.xpose.msra.mxu0 0.0
    %1700 = vmatpush.xpose.msra.mxu0 0.0
    %1701 = vmatpush.xpose.msra.mxu0 0.0
    %1702 = vmatpush.xpose.msra.mxu0 0.0
    %1703 = vmatpush.xpose.msra.mxu0 0.0
    %1704 = vmatpush.xpose.msra.mxu0 0.0
    %1705 = vmatpush.xpose.msra.mxu0 0.0
    %1706 = vmatpush.xpose.msra.mxu0 0.0
    %1707 = vmatpush.xpose.msra.mxu0 %v1691
    %1708 = vmatpush.xpose.msra.mxu0 %v1689
    %1709 = vmatmul.f32.gmra.mxu0 %v1687
    %v1710 = vpop.f32.mrf.mxu0
    %v1711 = vadd.f32 0.0, %v1710
    %1712 = vdwg.mxu0
    %1713 = vrot.lane.b32.xlu0 %v1066, 104
    %v1714 = vpop.permute.xlu0 %1713
    %1715 = vrot.lane.b32.xlu0 %v1116, 104
    %v1716 = vpop.permute.xlu0 %1715
    %1717 = vrot.lane.b32.xlu0 %v1119, 104
    %v1718 = vpop.permute.xlu0 %1717
    %v1719 = vsel %vm322, %v1714, 0
    %v1721 = vsel %vm322, %v1716, 0
    %v1723 = vsel %vm322, %v1718, 0
    %1725 = vmatpush.xpose.msra.mxu0 0.0
    %1726 = vmatpush.xpose.msra.mxu0 0.0
    %1727 = vmatpush.xpose.msra.mxu0 0.0
    %1728 = vmatpush.xpose.msra.mxu0 0.0
    %1729 = vmatpush.xpose.msra.mxu0 0.0
    %1730 = vmatpush.xpose.msra.mxu0 0.0
    %1731 = vmatpush.xpose.msra.mxu0 0.0
    %1732 = vmatpush.xpose.msra.mxu0 0.0
    %1733 = vmatpush.xpose.msra.mxu0 0.0
    %1734 = vmatpush.xpose.msra.mxu0 0.0
    %1735 = vmatpush.xpose.msra.mxu0 0.0
    %1736 = vmatpush.xpose.msra.mxu0 0.0
    %1737 = vmatpush.xpose.msra.mxu0 0.0
    %1738 = vmatpush.xpose.msra.mxu0 0.0
    %1739 = vmatpush.xpose.msra.mxu0 %v1723
    %1740 = vmatpush.xpose.msra.mxu0 %v1721
    %1741 = vmatmul.f32.gmra.mxu0 %v1719
    %v1742 = vpop.f32.mrf.mxu0
    %v1743 = vadd.f32 0.0, %v1742
    %1744 = vdwg.mxu0
    %v1745 = vsel %vm1228, %v1711, -inf
    %1746 = vmax.xlane.f32.xlu0 %v1745
    %v1747 = vpop.xlane.xlu0 %1746
    %v1748 = vsel %vm1228, %v1743, -inf
    %1749 = vmax.xlane.f32.xlu0 %v1748
    %v1750 = vpop.xlane.xlu0 %1749
    %v1751 = vsub.f32 %v1711, %v1747
    %v1752 = vsub.f32 %v1743, %v1750
    %v1753 = vmul.f32 %v1751, 1.442695
    %v1754 = vpow.pop %v1753
    %v1755 = vmul.f32 %v1752, 1.442695
    %v1756 = vpow.pop %v1755
    %v1757 = vsel %vm1228, %v1754, 0.0
    %1758 = vadd.xlane.f32.xlu0 %v1757
    %v1759 = vpop.xlane.xlu0 %1758
    %v1760 = vsel %vm1228, %v1756, 0.0
    %1761 = vadd.xlane.f32.xlu0 %v1760
    %v1762 = vpop.xlane.xlu0 %1761
    %v1763 = vrcp.pop %v1759
    %v1764 = vrcp.pop %v1762
    %v1765 = vmul.f32 %v1754, %v1763
    %v1766 = vmul.f32 %v1756, %v1764
    %1767 = vrot.lane.b32.xlu0 %v1159, 104
    %v1768 = vpop.permute.xlu0 %1767
    %1769 = vrot.lane.b32.xlu0 %v1162, 104
    %v1770 = vpop.permute.xlu0 %1769
    %v1774 = vsel %vm1228, %v1765, 0
    %1776 = vmatpush.msra.mxu0 0.0
    %1777 = vmatpush.msra.mxu0 0.0
    %1778 = vmatpush.msra.mxu0 0.0
    %1779 = vmatpush.msra.mxu0 0.0
    %1780 = vmatpush.msra.mxu0 0.0
    %1781 = vmatpush.msra.mxu0 0.0
    %1782 = vmatpush.msra.mxu0 0.0
    %1783 = vmatpush.msra.mxu0 0.0
    %1784 = vmatpush.msra.mxu0 0.0
    %1785 = vmatpush.msra.mxu0 0.0
    %1786 = vmatpush.msra.mxu0 0.0
    %1787 = vmatpush.msra.mxu0 0.0
    %1788 = vmatpush.msra.mxu0 0.0
    %1789 = vmatpush.msra.mxu0 0.0
    %1790 = vmatpush.msra.mxu0 %v1770
    %1791 = vmatpush.msra.mxu0 %v1768
    %1792 = vmatmul.f32.gmra.mxu0 %v1774
    %v1793 = vpop.f32.mrf.mxu0
    %v1794 = vadd.f32 0.0, %v1793
    %1795 = vdwg.mxu0
    %1796 = vrot.lane.b32.xlu0 %v1165, 104
    %v1797 = vpop.permute.xlu0 %1796
    %1798 = vrot.lane.b32.xlu0 %v1168, 104
    %v1799 = vpop.permute.xlu0 %1798
    %v1803 = vsel %vm1228, %v1766, 0
    %1805 = vmatpush.msra.mxu0 0.0
    %1806 = vmatpush.msra.mxu0 0.0
    %1807 = vmatpush.msra.mxu0 0.0
    %1808 = vmatpush.msra.mxu0 0.0
    %1809 = vmatpush.msra.mxu0 0.0
    %1810 = vmatpush.msra.mxu0 0.0
    %1811 = vmatpush.msra.mxu0 0.0
    %1812 = vmatpush.msra.mxu0 0.0
    %1813 = vmatpush.msra.mxu0 0.0
    %1814 = vmatpush.msra.mxu0 0.0
    %1815 = vmatpush.msra.mxu0 0.0
    %1816 = vmatpush.msra.mxu0 0.0
    %1817 = vmatpush.msra.mxu0 0.0
    %1818 = vmatpush.msra.mxu0 0.0
    %1819 = vmatpush.msra.mxu0 %v1799
    %1820 = vmatpush.msra.mxu0 %v1797
    %1821 = vmatmul.f32.gmra.mxu0 %v1803
    %v1822 = vpop.f32.mrf.mxu0
    %v1823 = vadd.f32 0.0, %v1822
    %1824 = vdwg.mxu0
    %v1825 = vld [vmem:[#allocation14 + $0x18] sm:$0xff]
    %v1827 = vsel %vm322, %v1794, 0
    %v1830 = vsel %vm322, %v1823, 0
    %1832 = vmatpush.msra.mxu0 0.0
    %1833 = vmatpush.msra.mxu0 0.0
    %1834 = vmatpush.msra.mxu0 0.0
    %1835 = vmatpush.msra.mxu0 0.0
    %1836 = vmatpush.msra.mxu0 0.0
    %1837 = vmatpush.msra.mxu0 0.0
    %1838 = vmatpush.msra.mxu0 0.0
    %1839 = vmatpush.msra.mxu0 0.0
    %1840 = vmatpush.msra.mxu0 0.0
    %1841 = vmatpush.msra.mxu0 0.0
    %1842 = vmatpush.msra.mxu0 0.0
    %1843 = vmatpush.msra.mxu0 0.0
    %1844 = vmatpush.msra.mxu0 0.0
    %1845 = vmatpush.msra.mxu0 0.0
    %1846 = vmatpush.msra.mxu0 0.0
    %1847 = vmatpush.msra.mxu0 %v1825
    %1848 = vmatmul.f32.gmra.mxu0 %v1827
    %v1849 = vpop.f32.mrf.mxu0
    %v1850 = vadd.f32 0.0, %v1849
    %1851 = vmatmul.f32.gmra.mxu0 %v1830
    %v1852 = vpop.f32.mrf.mxu0
    %v1853 = vadd.f32 0.0, %v1852
    %1854 = vdwg.mxu0
    %v1855 = vadd.f32 %v1679, %v1850
    %v1856 = vadd.f32 %v1680, %v1853
    %v1857 = vld [vmem:[%s19] sm:$0x1]
    %v1859 = vperm.slane %v1857, 0
    %v1861 = vadd.f32 %v1855, %v1859
    %v1862 = vadd.f32 %v1856, %v1859
    %v1863 = vadd.f32 %v1027, %v1861
    %v1864 = vadd.f32 %v1028, %v1862
    %v1865 = vsel %vm252, %v1863, 0.0
    %1866 = vadd.xlane.f32.xlu0 %v1865
    %v1867 = vpop.xlane.xlu0 %1866
    %v1868 = vsel %vm252, %v1864, 0.0
    %1869 = vadd.xlane.f32.xlu0 %v1868
    %v1870 = vpop.xlane.xlu0 %1869
    %v1871 = vmul.f32 %v1867, %v978
    %v1872 = vmul.f32 %v1870, %v978
    %v1873 = vsub.f32 %v1863, %v1871
    %v1874 = vsub.f32 %v1864, %v1872
    %v1875 = vmul.f32 %v1873, %v1873
    %v1876 = vmul.f32 %v1874, %v1874
    %v1877 = vsel %vm252, %v1875, 0.0
    %1878 = vadd.xlane.f32.xlu0 %v1877
    %v1879 = vpop.xlane.xlu0 %1878
    %v1880 = vsel %vm252, %v1876, 0.0
    %1881 = vadd.xlane.f32.xlu0 %v1880
    %v1882 = vpop.xlane.xlu0 %1881
    %v1883 = vmul.f32 %v1879, %v978
    %v1884 = vmul.f32 %v1882, %v978
    %v1885 = vadd.f32 %v1883, 1e-05
    %v1886 = vadd.f32 %v1884, 1e-05
    %v1887 = vrsqrt.pop %v1885
    %v1888 = vmul.f32 %v1887, %v1885
    %v1889 = vmul.f32 %v1888, %v1887
    %v1890 = vmul.f32 0.5, %v1889
    %v1891 = vsub.f32 1.5, %v1890
    %v1892 = vmul.f32 %v1887, %v1891
    %vm1893 = vweird.f32 %v1885
    %vm1894 = vweird.f32 %v1887
    %vm1895 = vmor %vm1893, %vm1894
    %v1896 = vsel %vm1895, %v1887, %v1892
    %v1897 = vrsqrt.pop %v1886
    %v1898 = vmul.f32 %v1897, %v1886
    %v1899 = vmul.f32 %v1898, %v1897
    %v1900 = vmul.f32 0.5, %v1899
    %v1901 = vsub.f32 1.5, %v1900
    %v1902 = vmul.f32 %v1897, %v1901
    %vm1903 = vweird.f32 %v1886
    %vm1904 = vweird.f32 %v1897
    %vm1905 = vmor %vm1903, %vm1904
    %v1906 = vsel %vm1905, %v1897, %v1902
    %v1907 = vmul.f32 %v1873, %v1896
    %v1908 = vmul.f32 %v1874, %v1906
    %v1909 = vld [vmem:[%s20] sm:$0x1]
    %v1911 = vperm.slane %v1909, 0
    %v1913 = vmul.f32 %v1907, %v1911
    %v1914 = vmul.f32 %v1908, %v1911
    %v1915 = vld [vmem:[%s21] sm:$0x1]
    %v1917 = vperm.slane %v1915, 0
    %v1919 = vadd.f32 %v1913, %v1917
    %v1920 = vadd.f32 %v1914, %v1917
    %v1921 = vld [vmem:[#allocation16] sm:$0xff]
    %v1922 = vld [vmem:[#allocation16 + $0x8] sm:$0xff]
    %v1923 = vld [vmem:[#allocation16 + $0x10] sm:$0xff]
    %v1924 = vld [vmem:[#allocation16 + $0x18] sm:$0xff]
    %v1925 = vld [vmem:[%s23] sm:$0x1]
    %v1927 = vperm.slane %v1925, 0
    %v1930 = vsel %vm252, %v1919, 0
    %v1933 = vsel %vm252, %v1920, 0
    %1935 = vmatpush.msra.mxu0 0.0
    %1936 = vmatpush.msra.mxu0 0.0
    %1937 = vmatpush.msra.mxu0 0.0
    %1938 = vmatpush.msra.mxu0 0.0
    %1939 = vmatpush.msra.mxu0 0.0
    %1940 = vmatpush.msra.mxu0 0.0
    %1941 = vmatpush.msra.mxu0 0.0
    %1942 = vmatpush.msra.mxu0 0.0
    %1943 = vmatpush.msra.mxu0 0.0
    %1944 = vmatpush.msra.mxu0 0.0
    %1945 = vmatpush.msra.mxu0 0.0
    %1946 = vmatpush.msra.mxu0 0.0
    %1947 = vmatpush.msra.mxu0 %v1924
    %1948 = vmatpush.msra.mxu0 %v1923
    %1949 = vmatpush.msra.mxu0 %v1922
    %1950 = vmatpush.msra.mxu0 %v1921
    %1951 = vmatmul.f32.gmra.mxu0 %v1930
    %v1952 = vpop.f32.mrf.mxu0
    %v1953 = vadd.f32 %v1927, %v1952
    %1954 = vmatmul.f32.gmra.mxu0 %v1933
    %v1955 = vpop.f32.mrf.mxu0
    %v1956 = vadd.f32 %v1927, %v1955
    %1957 = vdwg.mxu0
    %v1958 = vmax.f32 %v1953, 0.0
    %v1959 = vmax.f32 %v1956, 0.0
    %v1960 = vld [vmem:[%s24] sm:$0xff]
    %v1961 = vld [vmem:[%s24 + $0x8] sm:$0xff]
    %v1962 = vld [vmem:[%s24 + $0x10] sm:$0xff]
    %v1963 = vld [vmem:[%s24 + $0x18] sm:$0xff]
    %v1964 = vld [vmem:[%s24 + $0x20] sm:$0xff]
    %v1965 = vld [vmem:[%s24 + $0x28] sm:$0xff]
    %v1966 = vld [vmem:[%s24 + $0x30] sm:$0xff]
    %v1967 = vld [vmem:[%s24 + $0x38] sm:$0xff]
    %v1968 = vld [vmem:[%s25] sm:$0x1]
    %v1970 = vperm.slane %v1968, 0
    %vm1972 = vcmask 523264
    %v1974 = vsel %vm1972, %v1958, 0
    %v1977 = vsel %vm1972, %v1959, 0
    %1979 = vmatpush.msra.mxu0 0.0
    %1980 = vmatpush.msra.mxu0 0.0
    %1981 = vmatpush.msra.mxu0 0.0
    %1982 = vmatpush.msra.mxu0 0.0
    %1983 = vmatpush.msra.mxu0 0.0
    %1984 = vmatpush.msra.mxu0 0.0
    %1985 = vmatpush.msra.mxu0 0.0
    %1986 = vmatpush.msra.mxu0 0.0
    %1987 = vmatpush.msra.mxu0 %v1967
    %1988 = vmatpush.msra.mxu0 %v1966
    %1989 = vmatpush.msra.mxu0 %v1965
    %1990 = vmatpush.msra.mxu0 %v1964
    %1991 = vmatpush.msra.mxu0 %v1963
    %1992 = vmatpush.msra.mxu0 %v1962
    %1993 = vmatpush.msra.mxu0 %v1961
    %1994 = vmatpush.msra.mxu0 %v1960
    %1995 = vmatmul.f32.gmra.mxu0 %v1974
    %v1996 = vpop.f32.mrf.mxu0
    %v1997 = vadd.f32 %v1970, %v1996
    %1998 = vmatmul.f32.gmra.mxu0 %v1977
    %v1999 = vpop.f32.mrf.mxu0
    %v2000 = vadd.f32 %v1970, %v1999
    %2001 = vdwg.mxu0
    %v2002 = vadd.f32 %v1919, %v1997
    %v2003 = vadd.f32 %v1920, %v2000
    %v2004 = vsel %vm252, %v2002, 0.0
    %2005 = vadd.xlane.f32.xlu0 %v2004
    %v2006 = vpop.xlane.xlu0 %2005
    %v2007 = vsel %vm252, %v2003, 0.0
    %2008 = vadd.xlane.f32.xlu0 %v2007
    %v2009 = vpop.xlane.xlu0 %2008
    %v2010 = vmul.f32 %v2006, %v978
    %v2011 = vmul.f32 %v2009, %v978
    %v2012 = vsub.f32 %v2002, %v2010
    %v2013 = vsub.f32 %v2003, %v2011
    %v2014 = vmul.f32 %v2012, %v2012
    %v2015 = vmul.f32 %v2013, %v2013
    %v2016 = vsel %vm252, %v2014, 0.0
    %2017 = vadd.xlane.f32.xlu0 %v2016
    %v2018 = vpop.xlane.xlu0 %2017
    %v2019 = vsel %vm252, %v2015, 0.0
    %2020 = vadd.xlane.f32.xlu0 %v2019
    %v2021 = vpop.xlane.xlu0 %2020
    %v2022 = vmul.f32 %v2018, %v978
    %v2023 = vmul.f32 %v2021, %v978
    %v2024 = vadd.f32 %v2022, 1e-05
    %v2025 = vadd.f32 %v2023, 1e-05
    %v2026 = vrsqrt.pop %v2024
    %v2027 = vmul.f32 %v2026, %v2024
    %v2028 = vmul.f32 %v2027, %v2026
    %v2029 = vmul.f32 0.5, %v2028
    %v2030 = vsub.f32 1.5, %v2029
    %v2031 = vmul.f32 %v2026, %v2030
    %vm2032 = vweird.f32 %v2024
    %vm2033 = vweird.f32 %v2026
    %vm2034 = vmor %vm2032, %vm2033
    %v2035 = vsel %vm2034, %v2026, %v2031
    %v2036 = vrsqrt.pop %v2025
    %v2037 = vmul.f32 %v2036, %v2025
    %v2038 = vmul.f32 %v2037, %v2036
    %v2039 = vmul.f32 0.5, %v2038
    %v2040 = vsub.f32 1.5, %v2039
    %v2041 = vmul.f32 %v2036, %v2040
    %vm2042 = vweird.f32 %v2025
    %vm2043 = vweird.f32 %v2036
    %vm2044 = vmor %vm2042, %vm2043
    %v2045 = vsel %vm2044, %v2036, %v2041
    %v2046 = vmul.f32 %v2012, %v2035
    %v2047 = vmul.f32 %v2013, %v2045
    %v2048 = vld [vmem:[%s26] sm:$0x1]
    %v2050 = vperm.slane %v2048, 0
    %v2052 = vmul.f32 %v2046, %v2050
    %v2053 = vmul.f32 %v2047, %v2050
    %v2054 = vld [vmem:[%s27] sm:$0x1]
    %v2056 = vperm.slane %v2054, 0
    %v2058 = vadd.f32 %v2052, %v2056
    %v2059 = vadd.f32 %v2053, %v2056
    %2060 = vst.msk [vmem:[#allocation17] sm:$0xff] %vm252, %v2058
    %2061 = vst.msk [vmem:[#allocation17 + $0x8] sm:$0xff] %vm252, %v2059
    // Predicated region
    $region150: #{tpu_custom_call.1} parent=1 // pred_check
      _
    $region151: #{tpu_custom_call.1} parent=1 // pred_check_branch
      %2063 = sbr.rel (0) target = $region153
    $region152: #{tpu_custom_call.1} parent=1 // pred_region
      %2065 = vsyncadd [#allocation4], 0
      %s2066 = sshll.u32 [#allocation17], 4
      %s2067 = int_to_ptr.vmem [resolvable:$true] %s2066
      %s2068 = sshll.u32 %s28, 4
      %s2069 = int_to_ptr.hbm [resolvable:$true] %s2068
      %2074 = dma.vmem_to_hbm [thread:$0]  %s2067, 256, %s2069, [#allocation4], 128, 128, 8
    $region153: #{tpu_custom_call.1} parent=1 // pred_fallthru
      _
    // Predicated region
    $region154: #{tpu_custom_call.1} parent=1 // pred_check
      _
    $region155: #{tpu_custom_call.1} parent=1 // pred_check_branch
      %2076 = sbr.rel (0) target = $region157
    $region156: #{tpu_custom_call.1} parent=1 // pred_region
      %2078 = dma.done [#allocation4], 256
    $region157: #{tpu_custom_call.1} parent=1 // pred_fallthru
      _
    %2079 = vsyncpa [#allocation3], 1
    %2080 = vsyncpa [#allocation6], 1
    %2081 = vsyncpa [#allocation9], 1
    %2082 = vsyncpa [#allocation12], 1
    %2083 = vsyncpa [#allocation15], 1
    %2084 = vsyncpa [#allocation4], 1

</llo_original>
